<compile_context>
chip_gen: v5e
topology: v5e:2x2
jax: 0.10.0
libtpu: 0.0.40
codegen_flags: <defaults>
</compile_context>

<pallas_src>
import functools

import numpy as np

import jax
import jax.numpy as jnp
from jax import lax
from jax.experimental import pallas as pl
from jax.experimental.pallas import tpu as pltpu


# ---------------------------------------------------------------------------
# Packed per-layer parameter layout
# ---------------------------------------------------------------------------
V_N1W, V_N1B, V_N2W, V_N2B, V_N3W, V_N3B = 0, 1, 2, 3, 4, 5
V_SQB, V_SKB, V_SVB, V_PROJB = 6, 7, 8, 9
V_CQB, V_CKB, V_CVB, V_CPROJB = 10, 11, 12, 13
V_FC2B = 14
N_VEC = 16                                    # padded to 16 rows

M_SQ, M_SK, M_SV, M_SPROJ, M_CQ, M_CK, M_CV, M_CPROJ = range(8)
N_MAT = 8


# ---------------------------------------------------------------------------
# Fused decoder stack: grid=(batch_shards, depth), activation in VMEM scratch
# ---------------------------------------------------------------------------

def _decoder_stack_kernel(x0_ref, enc_ref, vec_ref, mat_ref, fc1w_ref,
                          fc1b_ref, fc2w_ref, normw_ref, normb_ref,
                          out_ref, x_acc, att_acc,
                          *, batch, seq, seq_real, num_heads, n_prj, causal,
                          eps):
  layer = pl.program_id(1)

  @pl.when(layer == 0)
  def _init():
    x_acc[...] = x0_ref[...]

  x = x_acc[...]                               # (batch*seq, D) f32
  d = x.shape[-1]
  dh = d // num_heads
  scale = float(dh) ** -0.5

  vec = vec_ref[0]                             # (N_VEC, D) f32, tiny

  def vrow(i):                                 # (1, D) broadcast-ready row
    return vec[i:i + 1, :]

  def mat(i):                                  # (D, D) bf16 weight slab (view)
    return mat_ref[0, i * d:(i + 1) * d, :]

  def layernorm(v, w, b):
    mu = jnp.mean(v, axis=-1, keepdims=True)
    c = v - mu
    var = jnp.mean(c * c, axis=-1, keepdims=True)
    return c * lax.rsqrt(var + eps) * w + b

  def linear(v, w, b):                         # bf16 MXU operands, f32 accum
    return jnp.dot(v.astype(jnp.bfloat16), w,
                   preferred_element_type=jnp.float32) + b

  def softmax(s):                              # rows are never fully masked
    s = s - jnp.max(s, axis=-1, keepdims=True)
    p = jnp.exp(s)
    return p * pl.reciprocal(jnp.sum(p, axis=-1, keepdims=True), approx=True)

  # Additive self-attention mask built in-kernel (no HBM bias matrices).
  # Batch separation is implicit (scores are per batch element); only padded
  # key rows and, optionally, the causal structure are masked.
  qi = lax.broadcasted_iota(jnp.int32, (seq, seq), 0)
  ki = lax.broadcasted_iota(jnp.int32, (seq, seq), 1)
  allow = ki < seq_real
  if causal:
    allow = jnp.logical_and(allow, ki <= qi)
  self_bias = jnp.where(allow, 0.0, -1e30).astype(jnp.float32)

  def mha_into(q, k, v, bias, rows):
    # Per-head attention for ONE batch element; heads are lane slices.
    # Per-head outputs go into att_acc so the output projection below is a
    # single full-K matmul.
    # TODO(synk): convert to lax.fori_loop(unroll=True) if num_heads grows.
    for h in range(num_heads):
      sl = slice(h * dh, (h + 1) * dh)
      s = lax.dot_general(q[:, sl], k[:, sl], (((1,), (1,)), ((), ())),
                          preferred_element_type=jnp.float32)
      if bias is not None:
        s = s + bias
      p = softmax(s)
      att_acc[rows, sl] = jnp.dot(p, v[:, sl],
                                  preferred_element_type=jnp.float32)

  # ------------------- self-attention (pre-norm) -------------------
  h1 = layernorm(x, vrow(V_N1W), vrow(V_N1B))
  q = linear(h1, mat(M_SQ), vrow(V_SQB)) * scale   # fold 1/sqrt(dh) into q
  k = linear(h1, mat(M_SK), vrow(V_SKB))
  v = linear(h1, mat(M_SV), vrow(V_SVB))
  for b in range(batch):                           # per-batch attention only
    rows = slice(b * seq, (b + 1) * seq)
    mha_into(q[rows], k[rows], v[rows], self_bias, rows)
  x = x + linear(att_acc[...], mat(M_SPROJ), vrow(V_PROJB))

  # ------------------- cross-attention over encoder tokens -------------------
  h2 = layernorm(x, vrow(V_N2W), vrow(V_N2B))
  qc = linear(h2, mat(M_CQ), vrow(V_CQB)) * scale
  for b in range(batch):
    e_b = enc_ref[b]                               # (M, D) bf16
    kc = jnp.dot(e_b, mat(M_CK),
                 preferred_element_type=jnp.float32) + vrow(V_CKB)
    vc = jnp.dot(e_b, mat(M_CV),
                 preferred_element_type=jnp.float32) + vrow(V_CVB)
    rows = slice(b * seq, (b + 1) * seq)
    mha_into(qc[rows], kc, vc, None, rows)
  x = x + linear(att_acc[...], mat(M_CPROJ), vrow(V_CPROJB))

  # ------------------- MLP -------------------
  h3 = layernorm(x, vrow(V_N3W), vrow(V_N3B))
  hid = linear(h3, fc1w_ref[0], fc1b_ref[0])
  # TODO(synk): PyTorch nn.GELU defaults to erf; tanh approximation used here.
  hid = 0.5 * hid * (1.0 + jnp.tanh(0.7978845608028654 *
                                    (hid + 0.044715 * hid * hid * hid)))
  x = x + linear(hid, fc2w_ref[0], vrow(V_FC2B))

  x_acc[...] = x

  # Final LayerNorm only on the rows that actually get projected.
  @pl.when(layer == pl.num_programs(1) - 1)
  def _final():
    nw = normw_ref[...]
    nb = normb_ref[...]
    for b in range(batch):
      tok = x[b * seq: b * seq + n_prj, :]         # (n_prj, D) contiguous rows
      out_ref[b] = layernorm(tok, nw, nb)


def _decoder_stack_call(x2d, enc, stacked, final, *, batch, shards, seq_pad,
                        seq_real, num_heads, n_prj, causal, eps=1e-5):
  _, d = x2d.shape
  bsh = batch // shards
  depth = stacked["vec"].shape[0]
  hidden = stacked["fc1_w"].shape[-1]
  m = enc.shape[1]

  kern = functools.partial(_decoder_stack_kernel, batch=bsh, seq=seq_pad,
                           seq_real=seq_real, num_heads=num_heads,
                           n_prj=n_prj, causal=causal, eps=eps)

  per_layer3 = lambda b_, l: (l, 0, 0)
  in_specs = [
      pl.BlockSpec((bsh * seq_pad, d), lambda b_, l: (b_, 0)),     # x0
      pl.BlockSpec((bsh, m, d),        lambda b_, l: (b_, 0, 0)),  # enc (bf16)
      pl.BlockSpec((1, N_VEC, d),      per_layer3),                # vec pack
      pl.BlockSpec((1, N_MAT * d, d),  per_layer3),                # mat pack
      pl.BlockSpec((1, d, hidden),     per_layer3),                # fc1_w
      pl.BlockSpec((1, 1, hidden),     per_layer3),                # fc1_b
      pl.BlockSpec((1, hidden, d),     per_layer3),                # fc2_w
      pl.BlockSpec((1, d),             lambda b_, l: (0, 0)),      # norm_w
      pl.BlockSpec((1, d),             lambda b_, l: (0, 0)),      # norm_b
  ]
  out_specs = pl.BlockSpec((bsh, n_prj, d), lambda b_, l: (b_, 0, 0))

  # VMEM budget: resident blocks + double-buffered per-layer weight streams.
  def nbytes(shape, dt):
    return int(np.prod(shape)) * jnp.dtype(dt).itemsize
  resident = (3 * nbytes((bsh * seq_pad, d), jnp.float32)   # x0 + 2 scratch
              + nbytes((bsh, m, d), jnp.bfloat16)
              + nbytes((bsh, n_prj, d), jnp.float32)
              + 2 * nbytes((1, d), jnp.float32))
  stream = (nbytes((1, N_VEC, d), jnp.float32)
            + nbytes((1, N_MAT * d, d), jnp.bfloat16)
            + nbytes((1, d, hidden), jnp.bfloat16)
            + nbytes((1, 1, hidden), jnp.float32)
            + nbytes((1, hidden, d), jnp.bfloat16))
  need = resident + 2 * stream
  try:
    phys = int(pltpu.get_tpu_info().vmem_capacity_bytes)
  except Exception:  # pragma: no cover - conservative fallback
    phys = 128 * 1024 * 1024
  vmem_limit = int(min(phys * 3 // 4, max(2 * need + (8 << 20), 16 << 20)))

  return pl.pallas_call(
      kern,
      out_shape=jax.ShapeDtypeStruct((batch, n_prj, d), jnp.float32),
      grid=(shards, depth),
      in_specs=in_specs,
      out_specs=out_specs,
      scratch_shapes=[pltpu.VMEM((bsh * seq_pad, d), jnp.float32),   # x_acc
                      pltpu.VMEM((bsh * seq_pad, d), jnp.float32)],  # att_acc
      compiler_params=pltpu.CompilerParams(
          dimension_semantics=("parallel", "arbitrary"),
          vmem_limit_bytes=vmem_limit),
  )(x2d, enc, stacked["vec"], stacked["mat"], stacked["fc1_w"],
    stacked["fc1_b"], stacked["fc2_w"], final["norm_w"], final["norm_b"])


# ---------------------------------------------------------------------------
# Packed label projection: (B, n_prj*D) @ (n_prj*D, T) in one small call
# ---------------------------------------------------------------------------

def _label_prj_kernel(tok_ref, w_ref, b_ref, out_ref):
  out_ref[...] = (jnp.dot(tok_ref[...].astype(jnp.bfloat16), w_ref[...],
                          preferred_element_type=jnp.float32) + b_ref[...])


def _label_prj_call(tok3d, prj_w, prj_b):
  bsz, n_prj, d = tok3d.shape
  t = prj_w.shape[-1]
  tok2d = tok3d.reshape(bsz, n_prj * d)            # free host-side reshape
  w2d = prj_w.reshape(n_prj * d, t)
  return pl.pallas_call(
      _label_prj_kernel,
      out_shape=jax.ShapeDtypeStruct((bsz, t), jnp.float32),
      grid=(1,),
      in_specs=[pl.BlockSpec((bsz, n_prj * d), lambda i: (0, 0)),
                pl.BlockSpec((n_prj * d, t), lambda i: (0, 0)),
                pl.BlockSpec((1, t), lambda i: (0, 0))],
      out_specs=pl.BlockSpec((bsz, t), lambda i: (0, 0)),
  )(tok2d, w2d, prj_b)


# ---------------------------------------------------------------------------
# Host-side glue (token prep / padding / output slicing)
# ---------------------------------------------------------------------------

def prepare_tokens(params, x_ids, batch):
  d = params["start_token"].shape[-1]
  if x_ids is not None:
    n = x_ids.shape[1]
    embeds = jnp.stack(
        [jnp.take(params["label_embed"][i], x_ids[:, i], axis=0)
         for i in range(n)], axis=1)                      # (B, N, D)
    start = jnp.broadcast_to(params["start_token"], (batch, 1, d))
    x = jnp.concatenate([start, embeds], axis=1)          # (B, N+1, D)
  else:
    n = 0
    x = jnp.broadcast_to(params["start_token"], (batch, 1, d))
  return x + params["pos_embed_dec"][:, : n + 1, :]


def decoder_forward(params, x_ids, enc_output, *, num_heads, batch_shards=1):
  b, m, d = enc_output.shape
  assert d % num_heads == 0
  x = prepare_tokens(params, x_ids, b)                    # (B, S, D)
  s_real = x.shape[1]
  s_pad = ((s_real + 7) // 8) * 8                         # sublane alignment
  # causal mask only when label ids are given (mask=True in the reference);
  # with a single start token (x_ids is None) no mask is applied.
  causal = x_ids is not None
  n_prj = min(len(params["num_classes"]), s_real)
  if b % batch_shards:
    batch_shards = 1

  x_pad = jnp.zeros((b, s_pad, d), jnp.float32).at[:, :s_real, :].set(x)
  x2d = x_pad.reshape(b * s_pad, d)
  enc_bf = enc_output.astype(jnp.bfloat16)

  # decode_only=False -> enc_proj is Identity
  tok = _decoder_stack_call(
      x2d, enc_bf, params["stacked"], params["final"],
      batch=b, shards=batch_shards, seq_pad=s_pad, seq_real=s_real,
      num_heads=num_heads, n_prj=n_prj, causal=causal)    # (B, n_prj, D)

  logits = _label_prj_call(tok, params["final"]["prj_w"][:n_prj],
                           params["final"]["prj_b"])      # (B, T)

  outs, off = [], 0
  for i in range(n_prj):
    nc = params["num_classes"][i]
    outs.append(logits[:, off:off + nc])
    off += nc
  return outs


# ---------------------------------------------------------------------------
# Pure-JAX reference (same math / matched precision) for a sanity check
# ---------------------------------------------------------------------------

def decoder_forward_reference(params, x_ids, enc_output, *, num_heads):
  b, m, d = enc_output.shape
  x = prepare_tokens(params, x_ids, b)
  s = x.shape[1]
  causal = x_ids is not None
  dh = d // num_heads
  scale = dh ** -0.5
  st = params["stacked"]
  depth = st["vec"].shape[0]

  def ln(v, w, b_):
    mu = jnp.mean(v, -1, keepdims=True)
    var = jnp.mean((v - mu) ** 2, -1, keepdims=True)
    return (v - mu) / jnp.sqrt(var + 1e-5) * w + b_

  def mmf(a, w):                                   # bf16 operands, f32 accum
    return jnp.einsum('...d,de->...e', a.astype(jnp.bfloat16), w,
                      preferred_element_type=jnp.float32)

  def heads(t):
    bb, ll, _ = t.shape
    return t.reshape(bb, ll, num_heads, dh).transpose(0, 2, 1, 3)

  def attn(q, k, v, causal_):
    sc = jnp.einsum("bhqd,bhkd->bhqk", q, k)       # q is pre-scaled
    if causal_:
      mask = jnp.tril(jnp.ones((q.shape[2], k.shape[2])))
      sc = jnp.where(mask > 0, sc, -1e30)
    p = jax.nn.softmax(sc, axis=-1)
    o = jnp.einsum("bhqk,bhkd->bhqd", p, v)
    return o.transpose(0, 2, 1, 3).reshape(q.shape[0], q.shape[2], d)

  for l in range(depth):
    vr = lambda i: st["vec"][l, i]
    ms = lambda i: st["mat"][l, i * d:(i + 1) * d, :]

    h = ln(x, vr(V_N1W), vr(V_N1B))
    q = (mmf(h, ms(M_SQ)) + vr(V_SQB)) * scale
    k = mmf(h, ms(M_SK)) + vr(V_SKB)
    v = mmf(h, ms(M_SV)) + vr(V_SVB)
    a = attn(heads(q), heads(k), heads(v), causal)
    x = x + mmf(a, ms(M_SPROJ)) + vr(V_PROJB)

    h = ln(x, vr(V_N2W), vr(V_N2B))
    qc = (mmf(h, ms(M_CQ)) + vr(V_CQB)) * scale
    kc = mmf(enc_output, ms(M_CK)) + vr(V_CKB)
    vc = mmf(enc_output, ms(M_CV)) + vr(V_CVB)
    a = attn(heads(qc), heads(kc), heads(vc), False)
    x = x + mmf(a, ms(M_CPROJ)) + vr(V_CPROJB)

    h = ln(x, vr(V_N3W), vr(V_N3B))
    hid = mmf(h, st["fc1_w"][l]) + st["fc1_b"][l]
    hid = 0.5 * hid * (1.0 + jnp.tanh(0.7978845608028654 *
                                      (hid + 0.044715 * hid ** 3)))
    x = x + mmf(hid, st["fc2_w"][l]) + vr(V_FC2B)

  fin = params["final"]
  n_prj = min(len(params["num_classes"]), s)
  xn = ln(x[:, :n_prj, :], fin["norm_w"], fin["norm_b"])
  outs, off = [], 0
  for i in range(n_prj):
    nc = params["num_classes"][i]
    logit = (jnp.dot(xn[:, i, :].astype(jnp.bfloat16), fin["prj_w"][i],
                     preferred_element_type=jnp.float32) + fin["prj_b"][0])
    outs.append(logit[:, off:off + nc])
    off += nc
  return outs


# ---------------------------------------------------------------------------
# Deterministic parameter init (synthetic; mirrors module __init__ shapes)
# ---------------------------------------------------------------------------

def init_params(key, embed_dim, num_classes, id_len, depth, mlp_ratio):
  d = embed_dim
  hidden = int(d * mlp_ratio)
  keys = iter(jax.random.split(key, 64 + 32 * depth))

  def tn(shape, std=0.02):
    return (std * jax.random.truncated_normal(next(keys), -2.0, 2.0, shape)
            ).astype(jnp.float32)

  # vector pack: LN weights are 1, all linear biases are 0 (module init)
  vec = np.zeros((depth, N_VEC, d), np.float32)
  vec[:, V_N1W] = 1.0
  vec[:, V_N2W] = 1.0
  vec[:, V_N3W] = 1.0
  vec = jnp.asarray(vec)

  # matrix pack: [sq, sk, sv, sproj, cq, ck, cv, cproj] stacked along rows
  mats = []
  for _ in range(depth):
    per = [tn((d, d)) for _ in range(N_MAT)]
    mats.append(jnp.concatenate(per, axis=0))            # (8*D, D)
  mat = jnp.stack(mats, axis=0).astype(jnp.bfloat16)      # (depth, 8*D, D)

  fc1_w = jnp.stack([tn((d, hidden)) for _ in range(depth)]
                    ).astype(jnp.bfloat16)
  fc2_w = jnp.stack([tn((hidden, d)) for _ in range(depth)]
                    ).astype(jnp.bfloat16)
  fc1_b = jnp.zeros((depth, 1, hidden), jnp.float32)

  stacked = {"vec": vec, "mat": mat, "fc1_w": fc1_w, "fc1_b": fc1_b,
             "fc2_w": fc2_w}

  # Pack all label projection heads into one lane-dense tensor, padded to a
  # multiple of 128 lanes.  prj_w[i] is zero outside its column segment, so
  # concat_i(token_i) @ vstack_i(prj_w[i]) produces each head's logits.
  total = sum(num_classes)
  t_pad = max(128, ((total + 127) // 128) * 128)
  prj_w = np.zeros((len(num_classes), d, t_pad), np.float32)
  off = 0
  for i, nc in enumerate(num_classes):
    prj_w[i, :, off:off + nc] = np.asarray(tn((d, nc)))
    off += nc
  final = {"norm_w": jnp.ones((1, d), jnp.float32),
           "norm_b": jnp.zeros((1, d), jnp.float32),
           "prj_w": jnp.asarray(prj_w).astype(jnp.bfloat16),
           "prj_b": jnp.zeros((1, t_pad), jnp.float32)}

  return {
      "start_token": tn((1, 1, d)),
      "pos_embed_dec": tn((1, id_len + 1, d)),
      "label_embed": [jax.random.normal(next(keys), (nc, d), dtype=jnp.float32)
                      for nc in num_classes],
      "num_classes": list(num_classes),
      "stacked": stacked,
      "final": final,
  }


# ---------------------------------------------------------------------------

if __name__ == "__main__":
  EMBED_DIM = 32        # sub-128 lanes at demo scale; production D should be
  NUM_HEADS = 4         # a multiple of 128 for full vreg / MXU occupancy.
  DEPTH = 2
  MLP_RATIO = 4.0
  NUM_CLASSES = [17, 50]
  ID_LEN = len(NUM_CLASSES)
  B = 2
  ENC_TOKENS = 8

  root = jax.random.PRNGKey(0)
  k_param, k_enc, k_ids = jax.random.split(root, 3)

  params = init_params(k_param, EMBED_DIM, NUM_CLASSES, ID_LEN, DEPTH,
                       MLP_RATIO)

  x_ids = jnp.stack(
      [jax.random.randint(jax.random.fold_in(k_ids, i), (B,), 0, nc)
       for i, nc in enumerate(NUM_CLASSES)], axis=1).astype(jnp.int32)
  enc_output = jax.random.normal(k_enc, (B, ENC_TOKENS, EMBED_DIM),
                                 dtype=jnp.float32)

  # batch_shards=2 exercises the (v7x dual-TensorCore) parallel batch axis.
  outs = decoder_forward(params, x_ids, enc_output, num_heads=NUM_HEADS,
                         batch_shards=2)
  for o in outs:
    jax.block_until_ready(o)

  assert outs[0].shape == (B, NUM_CLASSES[0])
  assert outs[1].shape == (B, NUM_CLASSES[1])

  # numerical sanity check against a matched-precision pure-JAX reference
  refs = decoder_forward_reference(params, x_ids, enc_output,
                                   num_heads=NUM_HEADS)
  for o, r in zip(outs, refs):
    err = float(jnp.max(jnp.abs(o - r)))
    assert err < 1e-2, f"mismatch vs reference: {err}"

  print("KERNEL_OK")
</pallas_src>

<mosaic_0001>
module attributes {stable_mosaic.version = 11 : i64} {
  func.func @_decoder_stack_kernel(%arg0: i32, %arg1: i32, %arg2: memref<8x32xf32, #tpu.memory_space<vmem>>, %arg3: memref<1x8x32xbf16, #tpu.memory_space<vmem>>, %arg4: memref<1x16x32xf32, #tpu.memory_space<vmem>>, %arg5: memref<1x256x32xbf16, #tpu.memory_space<vmem>>, %arg6: memref<1x32x128xbf16, #tpu.memory_space<vmem>>, %arg7: memref<1x1x128xf32, #tpu.memory_space<vmem>>, %arg8: memref<1x128x32xbf16, #tpu.memory_space<vmem>>, %arg9: memref<1x32xf32, #tpu.memory_space<vmem>>, %arg10: memref<1x32xf32, #tpu.memory_space<vmem>>, %arg11: memref<1x2x32xf32, #tpu.memory_space<vmem>>, %arg12: memref<8x32xf32, #tpu.memory_space<vmem>>, %arg13: memref<8x32xf32, #tpu.memory_space<vmem>>) attributes {dimension_semantics = [#tpu.dimension_semantics<parallel>, #tpu.dimension_semantics<arbitrary>], iteration_bounds = array<i64: 2, 2>, scalar_prefetch = 0 : i64, scratch_operands = 2 : i64, tpu.core_type = #tpu.core_type<tc>, window_params = [{transform_indices = @transform_0, window_bounds = array<i64: 8, 32>}, {transform_indices = @transform_1, window_bounds = array<i64: 1, 8, 32>}, {transform_indices = @transform_2, window_bounds = array<i64: 1, 16, 32>}, {transform_indices = @transform_3, window_bounds = array<i64: 1, 256, 32>}, {transform_indices = @transform_4, window_bounds = array<i64: 1, 32, 128>}, {transform_indices = @transform_5, window_bounds = array<i64: 1, 1, 128>}, {transform_indices = @transform_6, window_bounds = array<i64: 1, 128, 32>}, {pipeline_mode = #tpu.pipeline_mode<synchronous>, transform_indices = @transform_7, window_bounds = array<i64: 1, 32>}, {pipeline_mode = #tpu.pipeline_mode<synchronous>, transform_indices = @transform_8, window_bounds = array<i64: 1, 32>}, {transform_indices = @transform_9, window_bounds = array<i64: 1, 2, 32>}]} {
    %c0_i32 = arith.constant 0 : i32
    %0 = arith.cmpi eq, %arg1, %c0_i32 : i32
    %1 = arith.extui %0 : i1 to i32
    %c0_i32_0 = arith.constant 0 : i32
    %2 = arith.cmpi ne, %1, %c0_i32_0 : i32
    scf.if %2 {
      %c0_118 = arith.constant 0 : index
      %c0_119 = arith.constant 0 : index
      %310 = vector.load %arg2[%c0_118, %c0_119] : memref<8x32xf32, #tpu.memory_space<vmem>>, vector<8x32xf32>
      %c0_120 = arith.constant 0 : index
      %c0_121 = arith.constant 0 : index
      %311 = vector.load %arg12[%c0_120, %c0_121] : memref<8x32xf32, #tpu.memory_space<vmem>>, vector<8x32xf32>
      tpu.vector_store %arg12[%c0_120, %c0_121], %310 {strides = array<i32>} : memref<8x32xf32, #tpu.memory_space<vmem>>, vector<8x32xf32>,
    } else {
    }
    %c0 = arith.constant 0 : index
    %c0_1 = arith.constant 0 : index
    %3 = vector.load %arg12[%c0, %c0_1] : memref<8x32xf32, #tpu.memory_space<vmem>>, vector<8x32xf32>
    %c0_2 = arith.constant 0 : index
    %c0_3 = arith.constant 0 : index
    %c0_4 = arith.constant 0 : index
    %4 = vector.load %arg4[%c0_2, %c0_3, %c0_4] : memref<1x16x32xf32, #tpu.memory_space<vmem>>, vector<1x16x32xf32>
    %5 = vector.shape_cast %4 : vector<1x16x32xf32> to vector<16x32xf32>
    %6 = tpu.iota {dimensions = array<i32: 0>} : vector<8x8xi32>
    %7 = tpu.iota {dimensions = array<i32: 1>} : vector<8x8xi32>
    %c3_i32 = arith.constant 3 : i32
    %8 = vector.broadcast %c3_i32 : i32 to vector<8x8xi32>
    %9 = arith.cmpi slt, %7, %8 : vector<8x8xi32>
    %10 = arith.cmpi sle, %7, %6 : vector<8x8xi32>
    %11 = arith.andi %9, %10 : vector<8x8xi1>
    %cst = arith.constant 0.000000e+00 : f32
    %cst_5 = arith.constant -1.000000e+30 : f32
    %12 = vector.broadcast %cst : f32 to vector<8x8xf32>
    %13 = vector.broadcast %cst_5 : f32 to vector<8x8xf32>
    %14 = arith.select %11, %12, %13 : vector<8x8xi1>, vector<8x8xf32>
    %15 = vector.extract_strided_slice %5 {offsets = [0, 0], sizes = [1, 32], strides = [1, 1]} : vector<16x32xf32> to vector<1x32xf32>
    %16 = vector.extract_strided_slice %5 {offsets = [1, 0], sizes = [1, 32], strides = [1, 1]} : vector<16x32xf32> to vector<1x32xf32>
    %cst_6 = arith.constant dense<0.000000e+00> : vector<8xf32>
    %17 = vector.multi_reduction <add>, %3, %cst_6 [1] : vector<8x32xf32> to vector<8xf32>
    %18 = vector.shape_cast %17 : vector<8xf32> to vector<8x1xf32>
    %cst_7 = arith.constant 3.200000e+01 : f32
    %19 = vector.broadcast %cst_7 : f32 to vector<8x1xf32>
    %20 = arith.divf %18, %19 : vector<8x1xf32>
    %21 = vector.broadcast %20 : vector<8x1xf32> to vector<8x32xf32>
    %22 = arith.subf %3, %21 : vector<8x32xf32>
    %23 = arith.mulf %22, %22 : vector<8x32xf32>
    %cst_8 = arith.constant dense<0.000000e+00> : vector<8xf32>
    %24 = vector.multi_reduction <add>, %23, %cst_8 [1] : vector<8x32xf32> to vector<8xf32>
    %25 = vector.shape_cast %24 : vector<8xf32> to vector<8x1xf32>
    %cst_9 = arith.constant 3.200000e+01 : f32
    %26 = vector.broadcast %cst_9 : f32 to vector<8x1xf32>
    %27 = arith.divf %25, %26 : vector<8x1xf32>
    %cst_10 = arith.constant 9.99999974E-6 : f32
    %28 = vector.broadcast %cst_10 : f32 to vector<8x1xf32>
    %29 = arith.addf %27, %28 : vector<8x1xf32>
    %30 = math.rsqrt %29 : vector<8x1xf32>
    %31 = vector.broadcast %30 : vector<8x1xf32> to vector<8x32xf32>
    %32 = arith.mulf %22, %31 : vector<8x32xf32>
    %33 = vector.broadcast %15 : vector<1x32xf32> to vector<8x32xf32>
    %34 = arith.mulf %32, %33 : vector<8x32xf32>
    %35 = vector.broadcast %16 : vector<1x32xf32> to vector<8x32xf32>
    %36 = arith.addf %34, %35 : vector<8x32xf32>
    %c0_11 = arith.constant 0 : index
    %c0_12 = arith.constant 0 : index
    %c0_13 = arith.constant 0 : index
    %37 = vector.load %arg5[%c0_11, %c0_12, %c0_13] : memref<1x256x32xbf16, #tpu.memory_space<vmem>>, vector<1x32x32xbf16>
    %38 = vector.shape_cast %37 : vector<1x32x32xbf16> to vector<32x32xbf16>
    %39 = vector.extract_strided_slice %5 {offsets = [6, 0], sizes = [1, 32], strides = [1, 1]} : vector<16x32xf32> to vector<1x32xf32>
    %40 = arith.truncf %36 : vector<8x32xf32> to vector<8x32xbf16>
    %cst_14 = arith.constant dense<0.000000e+00> : vector<8x32xf32>
    %41 = tpu.matmul %40, %38, %cst_14 {dimension_numbers = #tpu.dot_dimension_numbers<[1], [0], [0], [1], [0, 0, 1, 1], [], []>} : vector<8x32xbf16>, vector<32x32xbf16>, vector<8x32xf32> -> vector<8x32xf32>
    %42 = vector.broadcast %39 : vector<1x32xf32> to vector<8x32xf32>
    %43 = arith.addf %41, %42 : vector<8x32xf32>
    %cst_15 = arith.constant 0.353553385 : f32
    %44 = vector.broadcast %cst_15 : f32 to vector<8x32xf32>
    %45 = arith.mulf %43, %44 : vector<8x32xf32>
    %c0_16 = arith.constant 0 : index
    %c32 = arith.constant 32 : index
    %c0_17 = arith.constant 0 : index
    %46 = vector.load %arg5[%c0_16, %c32, %c0_17] : memref<1x256x32xbf16, #tpu.memory_space<vmem>>, vector<1x32x32xbf16>
    %47 = vector.shape_cast %46 : vector<1x32x32xbf16> to vector<32x32xbf16>
    %48 = vector.extract_strided_slice %5 {offsets = [7, 0], sizes = [1, 32], strides = [1, 1]} : vector<16x32xf32> to vector<1x32xf32>
    %49 = arith.truncf %36 : vector<8x32xf32> to vector<8x32xbf16>
    %cst_18 = arith.constant dense<0.000000e+00> : vector<8x32xf32>
    %50 = tpu.matmul %49, %47, %cst_18 {dimension_numbers = #tpu.dot_dimension_numbers<[1], [0], [0], [1], [0, 0, 1, 1], [], []>} : vector<8x32xbf16>, vector<32x32xbf16>, vector<8x32xf32> -> vector<8x32xf32>
    %51 = vector.broadcast %48 : vector<1x32xf32> to vector<8x32xf32>
    %52 = arith.addf %50, %51 : vector<8x32xf32>
    %c0_19 = arith.constant 0 : index
    %c64 = arith.constant 64 : index
    %c0_20 = arith.constant 0 : index
    %53 = vector.load %arg5[%c0_19, %c64, %c0_20] : memref<1x256x32xbf16, #tpu.memory_space<vmem>>, vector<1x32x32xbf16>
    %54 = vector.shape_cast %53 : vector<1x32x32xbf16> to vector<32x32xbf16>
    %55 = vector.extract_strided_slice %5 {offsets = [8, 0], sizes = [1, 32], strides = [1, 1]} : vector<16x32xf32> to vector<1x32xf32>
    %56 = arith.truncf %36 : vector<8x32xf32> to vector<8x32xbf16>
    %cst_21 = arith.constant dense<0.000000e+00> : vector<8x32xf32>
    %57 = tpu.matmul %56, %54, %cst_21 {dimension_numbers = #tpu.dot_dimension_numbers<[1], [0], [0], [1], [0, 0, 1, 1], [], []>} : vector<8x32xbf16>, vector<32x32xbf16>, vector<8x32xf32> -> vector<8x32xf32>
    %58 = vector.broadcast %55 : vector<1x32xf32> to vector<8x32xf32>
    %59 = arith.addf %57, %58 : vector<8x32xf32>
    %60 = vector.extract_strided_slice %45 {offsets = [0, 0], sizes = [8, 8], strides = [1, 1]} : vector<8x32xf32> to vector<8x8xf32>
    %61 = vector.extract_strided_slice %52 {offsets = [0, 0], sizes = [8, 8], strides = [1, 1]} : vector<8x32xf32> to vector<8x8xf32>
    %cst_22 = arith.constant dense<0.000000e+00> : vector<8x8xf32>
    %62 = tpu.matmul %60, %61, %cst_22 {dimension_numbers = #tpu.dot_dimension_numbers<[1], [1], [0], [0], [0, 0, 1, 0], [], []>} : vector<8x8xf32>, vector<8x8xf32>, vector<8x8xf32> -> vector<8x8xf32>
    %63 = arith.addf %62, %14 : vector<8x8xf32>
    %cst_23 = arith.constant dense<0xFF800000> : vector<8xf32>
    %64 = vector.multi_reduction <maximumf>, %63, %cst_23 [1] : vector<8x8xf32> to vector<8xf32>
    %65 = vector.shape_cast %64 : vector<8xf32> to vector<8x1xf32>
    %66 = vector.broadcast %65 : vector<8x1xf32> to vector<8x8xf32>
    %67 = arith.subf %63, %66 : vector<8x8xf32>
    %68 = math.exp %67 : vector<8x8xf32>
    %cst_24 = arith.constant dense<0.000000e+00> : vector<8xf32>
    %69 = vector.multi_reduction <add>, %68, %cst_24 [1] : vector<8x8xf32> to vector<8xf32>
    %70 = vector.shape_cast %69 : vector<8xf32> to vector<8x1xf32>
    %71 = tpu.reciprocal %70 {approx = true} : vector<8x1xf32> -> vector<8x1xf32>
    %72 = vector.broadcast %71 : vector<8x1xf32> to vector<8x8xf32>
    %73 = arith.mulf %68, %72 : vector<8x8xf32>
    %74 = vector.extract_strided_slice %59 {offsets = [0, 0], sizes = [8, 8], strides = [1, 1]} : vector<8x32xf32> to vector<8x8xf32>
    %cst_25 = arith.constant dense<0.000000e+00> : vector<8x8xf32>
    %75 = tpu.matmul %73, %74, %cst_25 {dimension_numbers = #tpu.dot_dimension_numbers<[1], [0], [0], [1], [0, 0, 1, 1], [], []>} : vector<8x8xf32>, vector<8x8xf32>, vector<8x8xf32> -> vector<8x8xf32>
    %c0_26 = arith.constant 0 : index
    %c0_27 = arith.constant 0 : index
    %76 = vector.load %arg13[%c0_26, %c0_27] : memref<8x32xf32, #tpu.memory_space<vmem>>, vector<8x8xf32>
    tpu.vector_store %arg13[%c0_26, %c0_27], %75 {strides = array<i32>} : memref<8x32xf32, #tpu.memory_space<vmem>>, vector<8x8xf32>,
    %77 = vector.extract_strided_slice %45 {offsets = [0, 8], sizes = [8, 8], strides = [1, 1]} : vector<8x32xf32> to vector<8x8xf32>
    %78 = vector.extract_strided_slice %52 {offsets = [0, 8], sizes = [8, 8], strides = [1, 1]} : vector<8x32xf32> to vector<8x8xf32>
    %cst_28 = arith.constant dense<0.000000e+00> : vector<8x8xf32>
    %79 = tpu.matmul %77, %78, %cst_28 {dimension_numbers = #tpu.dot_dimension_numbers<[1], [1], [0], [0], [0, 0, 1, 0], [], []>} : vector<8x8xf32>, vector<8x8xf32>, vector<8x8xf32> -> vector<8x8xf32>
    %80 = arith.addf %79, %14 : vector<8x8xf32>
    %cst_29 = arith.constant dense<0xFF800000> : vector<8xf32>
    %81 = vector.multi_reduction <maximumf>, %80, %cst_29 [1] : vector<8x8xf32> to vector<8xf32>
    %82 = vector.shape_cast %81 : vector<8xf32> to vector<8x1xf32>
    %83 = vector.broadcast %82 : vector<8x1xf32> to vector<8x8xf32>
    %84 = arith.subf %80, %83 : vector<8x8xf32>
    %85 = math.exp %84 : vector<8x8xf32>
    %cst_30 = arith.constant dense<0.000000e+00> : vector<8xf32>
    %86 = vector.multi_reduction <add>, %85, %cst_30 [1] : vector<8x8xf32> to vector<8xf32>
    %87 = vector.shape_cast %86 : vector<8xf32> to vector<8x1xf32>
    %88 = tpu.reciprocal %87 {approx = true} : vector<8x1xf32> -> vector<8x1xf32>
    %89 = vector.broadcast %88 : vector<8x1xf32> to vector<8x8xf32>
    %90 = arith.mulf %85, %89 : vector<8x8xf32>
    %91 = vector.extract_strided_slice %59 {offsets = [0, 8], sizes = [8, 8], strides = [1, 1]} : vector<8x32xf32> to vector<8x8xf32>
    %cst_31 = arith.constant dense<0.000000e+00> : vector<8x8xf32>
    %92 = tpu.matmul %90, %91, %cst_31 {dimension_numbers = #tpu.dot_dimension_numbers<[1], [0], [0], [1], [0, 0, 1, 1], [], []>} : vector<8x8xf32>, vector<8x8xf32>, vector<8x8xf32> -> vector<8x8xf32>
    %c0_32 = arith.constant 0 : index
    %c8 = arith.constant 8 : index
    %93 = vector.load %arg13[%c0_32, %c8] : memref<8x32xf32, #tpu.memory_space<vmem>>, vector<8x8xf32>
    tpu.vector_store %arg13[%c0_32, %c8], %92 {strides = array<i32>} : memref<8x32xf32, #tpu.memory_space<vmem>>, vector<8x8xf32>,
    %94 = vector.extract_strided_slice %45 {offsets = [0, 16], sizes = [8, 8], strides = [1, 1]} : vector<8x32xf32> to vector<8x8xf32>
    %95 = vector.extract_strided_slice %52 {offsets = [0, 16], sizes = [8, 8], strides = [1, 1]} : vector<8x32xf32> to vector<8x8xf32>
    %cst_33 = arith.constant dense<0.000000e+00> : vector<8x8xf32>
    %96 = tpu.matmul %94, %95, %cst_33 {dimension_numbers = #tpu.dot_dimension_numbers<[1], [1], [0], [0], [0, 0, 1, 0], [], []>} : vector<8x8xf32>, vector<8x8xf32>, vector<8x8xf32> -> vector<8x8xf32>
    %97 = arith.addf %96, %14 : vector<8x8xf32>
    %cst_34 = arith.constant dense<0xFF800000> : vector<8xf32>
    %98 = vector.multi_reduction <maximumf>, %97, %cst_34 [1] : vector<8x8xf32> to vector<8xf32>
    %99 = vector.shape_cast %98 : vector<8xf32> to vector<8x1xf32>
    %100 = vector.broadcast %99 : vector<8x1xf32> to vector<8x8xf32>
    %101 = arith.subf %97, %100 : vector<8x8xf32>
    %102 = math.exp %101 : vector<8x8xf32>
    %cst_35 = arith.constant dense<0.000000e+00> : vector<8xf32>
    %103 = vector.multi_reduction <add>, %102, %cst_35 [1] : vector<8x8xf32> to vector<8xf32>
    %104 = vector.shape_cast %103 : vector<8xf32> to vector<8x1xf32>
    %105 = tpu.reciprocal %104 {approx = true} : vector<8x1xf32> -> vector<8x1xf32>
    %106 = vector.broadcast %105 : vector<8x1xf32> to vector<8x8xf32>
    %107 = arith.mulf %102, %106 : vector<8x8xf32>
    %108 = vector.extract_strided_slice %59 {offsets = [0, 16], sizes = [8, 8], strides = [1, 1]} : vector<8x32xf32> to vector<8x8xf32>
    %cst_36 = arith.constant dense<0.000000e+00> : vector<8x8xf32>
    %109 = tpu.matmul %107, %108, %cst_36 {dimension_numbers = #tpu.dot_dimension_numbers<[1], [0], [0], [1], [0, 0, 1, 1], [], []>} : vector<8x8xf32>, vector<8x8xf32>, vector<8x8xf32> -> vector<8x8xf32>
    %c0_37 = arith.constant 0 : index
    %c16 = arith.constant 16 : index
    %110 = vector.load %arg13[%c0_37, %c16] : memref<8x32xf32, #tpu.memory_space<vmem>>, vector<8x8xf32>
    tpu.vector_store %arg13[%c0_37, %c16], %109 {strides = array<i32>} : memref<8x32xf32, #tpu.memory_space<vmem>>, vector<8x8xf32>,
    %111 = vector.extract_strided_slice %45 {offsets = [0, 24], sizes = [8, 8], strides = [1, 1]} : vector<8x32xf32> to vector<8x8xf32>
    %112 = vector.extract_strided_slice %52 {offsets = [0, 24], sizes = [8, 8], strides = [1, 1]} : vector<8x32xf32> to vector<8x8xf32>
    %cst_38 = arith.constant dense<0.000000e+00> : vector<8x8xf32>
    %113 = tpu.matmul %111, %112, %cst_38 {dimension_numbers = #tpu.dot_dimension_numbers<[1], [1], [0], [0], [0, 0, 1, 0], [], []>} : vector<8x8xf32>, vector<8x8xf32>, vector<8x8xf32> -> vector<8x8xf32>
    %114 = arith.addf %113, %14 : vector<8x8xf32>
    %cst_39 = arith.constant dense<0xFF800000> : vector<8xf32>
    %115 = vector.multi_reduction <maximumf>, %114, %cst_39 [1] : vector<8x8xf32> to vector<8xf32>
    %116 = vector.shape_cast %115 : vector<8xf32> to vector<8x1xf32>
    %117 = vector.broadcast %116 : vector<8x1xf32> to vector<8x8xf32>
    %118 = arith.subf %114, %117 : vector<8x8xf32>
    %119 = math.exp %118 : vector<8x8xf32>
    %cst_40 = arith.constant dense<0.000000e+00> : vector<8xf32>
    %120 = vector.multi_reduction <add>, %119, %cst_40 [1] : vector<8x8xf32> to vector<8xf32>
    %121 = vector.shape_cast %120 : vector<8xf32> to vector<8x1xf32>
    %122 = tpu.reciprocal %121 {approx = true} : vector<8x1xf32> -> vector<8x1xf32>
    %123 = vector.broadcast %122 : vector<8x1xf32> to vector<8x8xf32>
    %124 = arith.mulf %119, %123 : vector<8x8xf32>
    %125 = vector.extract_strided_slice %59 {offsets = [0, 24], sizes = [8, 8], strides = [1, 1]} : vector<8x32xf32> to vector<8x8xf32>
    %cst_41 = arith.constant dense<0.000000e+00> : vector<8x8xf32>
    %126 = tpu.matmul %124, %125, %cst_41 {dimension_numbers = #tpu.dot_dimension_numbers<[1], [0], [0], [1], [0, 0, 1, 1], [], []>} : vector<8x8xf32>, vector<8x8xf32>, vector<8x8xf32> -> vector<8x8xf32>
    %c0_42 = arith.constant 0 : index
    %c24 = arith.constant 24 : index
    %127 = vector.load %arg13[%c0_42, %c24] : memref<8x32xf32, #tpu.memory_space<vmem>>, vector<8x8xf32>
    tpu.vector_store %arg13[%c0_42, %c24], %126 {strides = array<i32>} : memref<8x32xf32, #tpu.memory_space<vmem>>, vector<8x8xf32>,
    %c0_43 = arith.constant 0 : index
    %c0_44 = arith.constant 0 : index
    %128 = vector.load %arg13[%c0_43, %c0_44] : memref<8x32xf32, #tpu.memory_space<vmem>>, vector<8x32xf32>
    %c0_45 = arith.constant 0 : index
    %c96 = arith.constant 96 : index
    %c0_46 = arith.constant 0 : index
    %129 = vector.load %arg5[%c0_45, %c96, %c0_46] : memref<1x256x32xbf16, #tpu.memory_space<vmem>>, vector<1x32x32xbf16>
    %130 = vector.shape_cast %129 : vector<1x32x32xbf16> to vector<32x32xbf16>
    %131 = vector.extract_strided_slice %5 {offsets = [9, 0], sizes = [1, 32], strides = [1, 1]} : vector<16x32xf32> to vector<1x32xf32>
    %132 = arith.truncf %128 : vector<8x32xf32> to vector<8x32xbf16>
    %cst_47 = arith.constant dense<0.000000e+00> : vector<8x32xf32>
    %133 = tpu.matmul %132, %130, %cst_47 {dimension_numbers = #tpu.dot_dimension_numbers<[1], [0], [0], [1], [0, 0, 1, 1], [], []>} : vector<8x32xbf16>, vector<32x32xbf16>, vector<8x32xf32> -> vector<8x32xf32>
    %134 = vector.broadcast %131 : vector<1x32xf32> to vector<8x32xf32>
    %135 = arith.addf %133, %134 : vector<8x32xf32>
    %136 = arith.addf %3, %135 : vector<8x32xf32>
    %137 = vector.extract_strided_slice %5 {offsets = [2, 0], sizes = [1, 32], strides = [1, 1]} : vector<16x32xf32> to vector<1x32xf32>
    %138 = vector.extract_strided_slice %5 {offsets = [3, 0], sizes = [1, 32], strides = [1, 1]} : vector<16x32xf32> to vector<1x32xf32>
    %cst_48 = arith.constant dense<0.000000e+00> : vector<8xf32>
    %139 = vector.multi_reduction <add>, %136, %cst_48 [1] : vector<8x32xf32> to vector<8xf32>
    %140 = vector.shape_cast %139 : vector<8xf32> to vector<8x1xf32>
    %cst_49 = arith.constant 3.200000e+01 : f32
    %141 = vector.broadcast %cst_49 : f32 to vector<8x1xf32>
    %142 = arith.divf %140, %141 : vector<8x1xf32>
    %143 = vector.broadcast %142 : vector<8x1xf32> to vector<8x32xf32>
    %144 = arith.subf %136, %143 : vector<8x32xf32>
    %145 = arith.mulf %144, %144 : vector<8x32xf32>
    %cst_50 = arith.constant dense<0.000000e+00> : vector<8xf32>
    %146 = vector.multi_reduction <add>, %145, %cst_50 [1] : vector<8x32xf32> to vector<8xf32>
    %147 = vector.shape_cast %146 : vector<8xf32> to vector<8x1xf32>
    %cst_51 = arith.constant 3.200000e+01 : f32
    %148 = vector.broadcast %cst_51 : f32 to vector<8x1xf32>
    %149 = arith.divf %147, %148 : vector<8x1xf32>
    %cst_52 = arith.constant 9.99999974E-6 : f32
    %150 = vector.broadcast %cst_52 : f32 to vector<8x1xf32>
    %151 = arith.addf %149, %150 : vector<8x1xf32>
    %152 = math.rsqrt %151 : vector<8x1xf32>
    %153 = vector.broadcast %152 : vector<8x1xf32> to vector<8x32xf32>
    %154 = arith.mulf %144, %153 : vector<8x32xf32>
    %155 = vector.broadcast %137 : vector<1x32xf32> to vector<8x32xf32>
    %156 = arith.mulf %154, %155 : vector<8x32xf32>
    %157 = vector.broadcast %138 : vector<1x32xf32> to vector<8x32xf32>
    %158 = arith.addf %156, %157 : vector<8x32xf32>
    %c0_53 = arith.constant 0 : index
    %c128 = arith.constant 128 : index
    %c0_54 = arith.constant 0 : index
    %159 = vector.load %arg5[%c0_53, %c128, %c0_54] : memref<1x256x32xbf16, #tpu.memory_space<vmem>>, vector<1x32x32xbf16>
    %160 = vector.shape_cast %159 : vector<1x32x32xbf16> to vector<32x32xbf16>
    %161 = vector.extract_strided_slice %5 {offsets = [10, 0], sizes = [1, 32], strides = [1, 1]} : vector<16x32xf32> to vector<1x32xf32>
    %162 = arith.truncf %158 : vector<8x32xf32> to vector<8x32xbf16>
    %cst_55 = arith.constant dense<0.000000e+00> : vector<8x32xf32>
    %163 = tpu.matmul %162, %160, %cst_55 {dimension_numbers = #tpu.dot_dimension_numbers<[1], [0], [0], [1], [0, 0, 1, 1], [], []>} : vector<8x32xbf16>, vector<32x32xbf16>, vector<8x32xf32> -> vector<8x32xf32>
    %164 = vector.broadcast %161 : vector<1x32xf32> to vector<8x32xf32>
    %165 = arith.addf %163, %164 : vector<8x32xf32>
    %cst_56 = arith.constant 0.353553385 : f32
    %166 = vector.broadcast %cst_56 : f32 to vector<8x32xf32>
    %167 = arith.mulf %165, %166 : vector<8x32xf32>
    %c0_57 = arith.constant 0 : index
    %c0_58 = arith.constant 0 : index
    %c0_59 = arith.constant 0 : index
    %168 = vector.load %arg3[%c0_57, %c0_58, %c0_59] : memref<1x8x32xbf16, #tpu.memory_space<vmem>>, vector<1x8x32xbf16>
    %169 = vector.shape_cast %168 : vector<1x8x32xbf16> to vector<8x32xbf16>
    %c0_60 = arith.constant 0 : index
    %c160 = arith.constant 160 : index
    %c0_61 = arith.constant 0 : index
    %170 = vector.load %arg5[%c0_60, %c160, %c0_61] : memref<1x256x32xbf16, #tpu.memory_space<vmem>>, vector<1x32x32xbf16>
    %171 = vector.shape_cast %170 : vector<1x32x32xbf16> to vector<32x32xbf16>
    %cst_62 = arith.constant dense<0.000000e+00> : vector<8x32xf32>
    %172 = tpu.matmul %169, %171, %cst_62 {dimension_numbers = #tpu.dot_dimension_numbers<[1], [0], [0], [1], [0, 0, 1, 1], [], []>} : vector<8x32xbf16>, vector<32x32xbf16>, vector<8x32xf32> -> vector<8x32xf32>
    %173 = vector.extract_strided_slice %5 {offsets = [11, 0], sizes = [1, 32], strides = [1, 1]} : vector<16x32xf32> to vector<1x32xf32>
    %174 = vector.broadcast %173 : vector<1x32xf32> to vector<8x32xf32>
    %175 = arith.addf %172, %174 : vector<8x32xf32>
    %c0_63 = arith.constant 0 : index
    %c192 = arith.constant 192 : index
    %c0_64 = arith.constant 0 : index
    %176 = vector.load %arg5[%c0_63, %c192, %c0_64] : memref<1x256x32xbf16, #tpu.memory_space<vmem>>, vector<1x32x32xbf16>
    %177 = vector.shape_cast %176 : vector<1x32x32xbf16> to vector<32x32xbf16>
    %cst_65 = arith.constant dense<0.000000e+00> : vector<8x32xf32>
    %178 = tpu.matmul %169, %177, %cst_65 {dimension_numbers = #tpu.dot_dimension_numbers<[1], [0], [0], [1], [0, 0, 1, 1], [], []>} : vector<8x32xbf16>, vector<32x32xbf16>, vector<8x32xf32> -> vector<8x32xf32>
    %179 = vector.extract_strided_slice %5 {offsets = [12, 0], sizes = [1, 32], strides = [1, 1]} : vector<16x32xf32> to vector<1x32xf32>
    %180 = vector.broadcast %179 : vector<1x32xf32> to vector<8x32xf32>
    %181 = arith.addf %178, %180 : vector<8x32xf32>
    %182 = vector.extract_strided_slice %167 {offsets = [0, 0], sizes = [8, 8], strides = [1, 1]} : vector<8x32xf32> to vector<8x8xf32>
    %183 = vector.extract_strided_slice %175 {offsets = [0, 0], sizes = [8, 8], strides = [1, 1]} : vector<8x32xf32> to vector<8x8xf32>
    %cst_66 = arith.constant dense<0.000000e+00> : vector<8x8xf32>
    %184 = tpu.matmul %182, %183, %cst_66 {dimension_numbers = #tpu.dot_dimension_numbers<[1], [1], [0], [0], [0, 0, 1, 0], [], []>} : vector<8x8xf32>, vector<8x8xf32>, vector<8x8xf32> -> vector<8x8xf32>
    %cst_67 = arith.constant dense<0xFF800000> : vector<8xf32>
    %185 = vector.multi_reduction <maximumf>, %184, %cst_67 [1] : vector<8x8xf32> to vector<8xf32>
    %186 = vector.shape_cast %185 : vector<8xf32> to vector<8x1xf32>
    %187 = vector.broadcast %186 : vector<8x1xf32> to vector<8x8xf32>
    %188 = arith.subf %184, %187 : vector<8x8xf32>
    %189 = math.exp %188 : vector<8x8xf32>
    %cst_68 = arith.constant dense<0.000000e+00> : vector<8xf32>
    %190 = vector.multi_reduction <add>, %189, %cst_68 [1] : vector<8x8xf32> to vector<8xf32>
    %191 = vector.shape_cast %190 : vector<8xf32> to vector<8x1xf32>
    %192 = tpu.reciprocal %191 {approx = true} : vector<8x1xf32> -> vector<8x1xf32>
    %193 = vector.broadcast %192 : vector<8x1xf32> to vector<8x8xf32>
    %194 = arith.mulf %189, %193 : vector<8x8xf32>
    %195 = vector.extract_strided_slice %181 {offsets = [0, 0], sizes = [8, 8], strides = [1, 1]} : vector<8x32xf32> to vector<8x8xf32>
    %cst_69 = arith.constant dense<0.000000e+00> : vector<8x8xf32>
    %196 = tpu.matmul %194, %195, %cst_69 {dimension_numbers = #tpu.dot_dimension_numbers<[1], [0], [0], [1], [0, 0, 1, 1], [], []>} : vector<8x8xf32>, vector<8x8xf32>, vector<8x8xf32> -> vector<8x8xf32>
    %c0_70 = arith.constant 0 : index
    %c0_71 = arith.constant 0 : index
    %197 = vector.load %arg13[%c0_70, %c0_71] : memref<8x32xf32, #tpu.memory_space<vmem>>, vector<8x8xf32>
    tpu.vector_store %arg13[%c0_70, %c0_71], %196 {strides = array<i32>} : memref<8x32xf32, #tpu.memory_space<vmem>>, vector<8x8xf32>,
    %198 = vector.extract_strided_slice %167 {offsets = [0, 8], sizes = [8, 8], strides = [1, 1]} : vector<8x32xf32> to vector<8x8xf32>
    %199 = vector.extract_strided_slice %175 {offsets = [0, 8], sizes = [8, 8], strides = [1, 1]} : vector<8x32xf32> to vector<8x8xf32>
    %cst_72 = arith.constant dense<0.000000e+00> : vector<8x8xf32>
    %200 = tpu.matmul %198, %199, %cst_72 {dimension_numbers = #tpu.dot_dimension_numbers<[1], [1], [0], [0], [0, 0, 1, 0], [], []>} : vector<8x8xf32>, vector<8x8xf32>, vector<8x8xf32> -> vector<8x8xf32>
    %cst_73 = arith.constant dense<0xFF800000> : vector<8xf32>
    %201 = vector.multi_reduction <maximumf>, %200, %cst_73 [1] : vector<8x8xf32> to vector<8xf32>
    %202 = vector.shape_cast %201 : vector<8xf32> to vector<8x1xf32>
    %203 = vector.broadcast %202 : vector<8x1xf32> to vector<8x8xf32>
    %204 = arith.subf %200, %203 : vector<8x8xf32>
    %205 = math.exp %204 : vector<8x8xf32>
    %cst_74 = arith.constant dense<0.000000e+00> : vector<8xf32>
    %206 = vector.multi_reduction <add>, %205, %cst_74 [1] : vector<8x8xf32> to vector<8xf32>
    %207 = vector.shape_cast %206 : vector<8xf32> to vector<8x1xf32>
    %208 = tpu.reciprocal %207 {approx = true} : vector<8x1xf32> -> vector<8x1xf32>
    %209 = vector.broadcast %208 : vector<8x1xf32> to vector<8x8xf32>
    %210 = arith.mulf %205, %209 : vector<8x8xf32>
    %211 = vector.extract_strided_slice %181 {offsets = [0, 8], sizes = [8, 8], strides = [1, 1]} : vector<8x32xf32> to vector<8x8xf32>
    %cst_75 = arith.constant dense<0.000000e+00> : vector<8x8xf32>
    %212 = tpu.matmul %210, %211, %cst_75 {dimension_numbers = #tpu.dot_dimension_numbers<[1], [0], [0], [1], [0, 0, 1, 1], [], []>} : vector<8x8xf32>, vector<8x8xf32>, vector<8x8xf32> -> vector<8x8xf32>
    %c0_76 = arith.constant 0 : index
    %c8_77 = arith.constant 8 : index
    %213 = vector.load %arg13[%c0_76, %c8_77] : memref<8x32xf32, #tpu.memory_space<vmem>>, vector<8x8xf32>
    tpu.vector_store %arg13[%c0_76, %c8_77], %212 {strides = array<i32>} : memref<8x32xf32, #tpu.memory_space<vmem>>, vector<8x8xf32>,
    %214 = vector.extract_strided_slice %167 {offsets = [0, 16], sizes = [8, 8], strides = [1, 1]} : vector<8x32xf32> to vector<8x8xf32>
    %215 = vector.extract_strided_slice %175 {offsets = [0, 16], sizes = [8, 8], strides = [1, 1]} : vector<8x32xf32> to vector<8x8xf32>
    %cst_78 = arith.constant dense<0.000000e+00> : vector<8x8xf32>
    %216 = tpu.matmul %214, %215, %cst_78 {dimension_numbers = #tpu.dot_dimension_numbers<[1], [1], [0], [0], [0, 0, 1, 0], [], []>} : vector<8x8xf32>, vector<8x8xf32>, vector<8x8xf32> -> vector<8x8xf32>
    %cst_79 = arith.constant dense<0xFF800000> : vector<8xf32>
    %217 = vector.multi_reduction <maximumf>, %216, %cst_79 [1] : vector<8x8xf32> to vector<8xf32>
    %218 = vector.shape_cast %217 : vector<8xf32> to vector<8x1xf32>
    %219 = vector.broadcast %218 : vector<8x1xf32> to vector<8x8xf32>
    %220 = arith.subf %216, %219 : vector<8x8xf32>
    %221 = math.exp %220 : vector<8x8xf32>
    %cst_80 = arith.constant dense<0.000000e+00> : vector<8xf32>
    %222 = vector.multi_reduction <add>, %221, %cst_80 [1] : vector<8x8xf32> to vector<8xf32>
    %223 = vector.shape_cast %222 : vector<8xf32> to vector<8x1xf32>
    %224 = tpu.reciprocal %223 {approx = true} : vector<8x1xf32> -> vector<8x1xf32>
    %225 = vector.broadcast %224 : vector<8x1xf32> to vector<8x8xf32>
    %226 = arith.mulf %221, %225 : vector<8x8xf32>
    %227 = vector.extract_strided_slice %181 {offsets = [0, 16], sizes = [8, 8], strides = [1, 1]} : vector<8x32xf32> to vector<8x8xf32>
    %cst_81 = arith.constant dense<0.000000e+00> : vector<8x8xf32>
    %228 = tpu.matmul %226, %227, %cst_81 {dimension_numbers = #tpu.dot_dimension_numbers<[1], [0], [0], [1], [0, 0, 1, 1], [], []>} : vector<8x8xf32>, vector<8x8xf32>, vector<8x8xf32> -> vector<8x8xf32>
    %c0_82 = arith.constant 0 : index
    %c16_83 = arith.constant 16 : index
    %229 = vector.load %arg13[%c0_82, %c16_83] : memref<8x32xf32, #tpu.memory_space<vmem>>, vector<8x8xf32>
    tpu.vector_store %arg13[%c0_82, %c16_83], %228 {strides = array<i32>} : memref<8x32xf32, #tpu.memory_space<vmem>>, vector<8x8xf32>,
    %230 = vector.extract_strided_slice %167 {offsets = [0, 24], sizes = [8, 8], strides = [1, 1]} : vector<8x32xf32> to vector<8x8xf32>
    %231 = vector.extract_strided_slice %175 {offsets = [0, 24], sizes = [8, 8], strides = [1, 1]} : vector<8x32xf32> to vector<8x8xf32>
    %cst_84 = arith.constant dense<0.000000e+00> : vector<8x8xf32>
    %232 = tpu.matmul %230, %231, %cst_84 {dimension_numbers = #tpu.dot_dimension_numbers<[1], [1], [0], [0], [0, 0, 1, 0], [], []>} : vector<8x8xf32>, vector<8x8xf32>, vector<8x8xf32> -> vector<8x8xf32>
    %cst_85 = arith.constant dense<0xFF800000> : vector<8xf32>
    %233 = vector.multi_reduction <maximumf>, %232, %cst_85 [1] : vector<8x8xf32> to vector<8xf32>
    %234 = vector.shape_cast %233 : vector<8xf32> to vector<8x1xf32>
    %235 = vector.broadcast %234 : vector<8x1xf32> to vector<8x8xf32>
    %236 = arith.subf %232, %235 : vector<8x8xf32>
    %237 = math.exp %236 : vector<8x8xf32>
    %cst_86 = arith.constant dense<0.000000e+00> : vector<8xf32>
    %238 = vector.multi_reduction <add>, %237, %cst_86 [1] : vector<8x8xf32> to vector<8xf32>
    %239 = vector.shape_cast %238 : vector<8xf32> to vector<8x1xf32>
    %240 = tpu.reciprocal %239 {approx = true} : vector<8x1xf32> -> vector<8x1xf32>
    %241 = vector.broadcast %240 : vector<8x1xf32> to vector<8x8xf32>
    %242 = arith.mulf %237, %241 : vector<8x8xf32>
    %243 = vector.extract_strided_slice %181 {offsets = [0, 24], sizes = [8, 8], strides = [1, 1]} : vector<8x32xf32> to vector<8x8xf32>
    %cst_87 = arith.constant dense<0.000000e+00> : vector<8x8xf32>
    %244 = tpu.matmul %242, %243, %cst_87 {dimension_numbers = #tpu.dot_dimension_numbers<[1], [0], [0], [1], [0, 0, 1, 1], [], []>} : vector<8x8xf32>, vector<8x8xf32>, vector<8x8xf32> -> vector<8x8xf32>
    %c0_88 = arith.constant 0 : index
    %c24_89 = arith.constant 24 : index
    %245 = vector.load %arg13[%c0_88, %c24_89] : memref<8x32xf32, #tpu.memory_space<vmem>>, vector<8x8xf32>
    tpu.vector_store %arg13[%c0_88, %c24_89], %244 {strides = array<i32>} : memref<8x32xf32, #tpu.memory_space<vmem>>, vector<8x8xf32>,
    %c0_90 = arith.constant 0 : index
    %c0_91 = arith.constant 0 : index
    %246 = vector.load %arg13[%c0_90, %c0_91] : memref<8x32xf32, #tpu.memory_space<vmem>>, vector<8x32xf32>
    %c0_92 = arith.constant 0 : index
    %c224 = arith.constant 224 : index
    %c0_93 = arith.constant 0 : index
    %247 = vector.load %arg5[%c0_92, %c224, %c0_93] : memref<1x256x32xbf16, #tpu.memory_space<vmem>>, vector<1x32x32xbf16>
    %248 = vector.shape_cast %247 : vector<1x32x32xbf16> to vector<32x32xbf16>
    %249 = vector.extract_strided_slice %5 {offsets = [13, 0], sizes = [1, 32], strides = [1, 1]} : vector<16x32xf32> to vector<1x32xf32>
    %250 = arith.truncf %246 : vector<8x32xf32> to vector<8x32xbf16>
    %cst_94 = arith.constant dense<0.000000e+00> : vector<8x32xf32>
    %251 = tpu.matmul %250, %248, %cst_94 {dimension_numbers = #tpu.dot_dimension_numbers<[1], [0], [0], [1], [0, 0, 1, 1], [], []>} : vector<8x32xbf16>, vector<32x32xbf16>, vector<8x32xf32> -> vector<8x32xf32>
    %252 = vector.broadcast %249 : vector<1x32xf32> to vector<8x32xf32>
    %253 = arith.addf %251, %252 : vector<8x32xf32>
    %254 = arith.addf %136, %253 : vector<8x32xf32>
    %255 = vector.extract_strided_slice %5 {offsets = [4, 0], sizes = [1, 32], strides = [1, 1]} : vector<16x32xf32> to vector<1x32xf32>
    %256 = vector.extract_strided_slice %5 {offsets = [5, 0], sizes = [1, 32], strides = [1, 1]} : vector<16x32xf32> to vector<1x32xf32>
    %cst_95 = arith.constant dense<0.000000e+00> : vector<8xf32>
    %257 = vector.multi_reduction <add>, %254, %cst_95 [1] : vector<8x32xf32> to vector<8xf32>
    %258 = vector.shape_cast %257 : vector<8xf32> to vector<8x1xf32>
    %cst_96 = arith.constant 3.200000e+01 : f32
    %259 = vector.broadcast %cst_96 : f32 to vector<8x1xf32>
    %260 = arith.divf %258, %259 : vector<8x1xf32>
    %261 = vector.broadcast %260 : vector<8x1xf32> to vector<8x32xf32>
    %262 = arith.subf %254, %261 : vector<8x32xf32>
    %263 = arith.mulf %262, %262 : vector<8x32xf32>
    %cst_97 = arith.constant dense<0.000000e+00> : vector<8xf32>
    %264 = vector.multi_reduction <add>, %263, %cst_97 [1] : vector<8x32xf32> to vector<8xf32>
    %265 = vector.shape_cast %264 : vector<8xf32> to vector<8x1xf32>
    %cst_98 = arith.constant 3.200000e+01 : f32
    %266 = vector.broadcast %cst_98 : f32 to vector<8x1xf32>
    %267 = arith.divf %265, %266 : vector<8x1xf32>
    %cst_99 = arith.constant 9.99999974E-6 : f32
    %268 = vector.broadcast %cst_99 : f32 to vector<8x1xf32>
    %269 = arith.addf %267, %268 : vector<8x1xf32>
    %270 = math.rsqrt %269 : vector<8x1xf32>
    %271 = vector.broadcast %270 : vector<8x1xf32> to vector<8x32xf32>
    %272 = arith.mulf %262, %271 : vector<8x32xf32>
    %273 = vector.broadcast %255 : vector<1x32xf32> to vector<8x32xf32>
    %274 = arith.mulf %272, %273 : vector<8x32xf32>
    %275 = vector.broadcast %256 : vector<1x32xf32> to vector<8x32xf32>
    %276 = arith.addf %274, %275 : vector<8x32xf32>
    %c0_100 = arith.constant 0 : index
    %c0_101 = arith.constant 0 : index
    %c0_102 = arith.constant 0 : index
    %277 = vector.load %arg6[%c0_100, %c0_101, %c0_102] : memref<1x32x128xbf16, #tpu.memory_space<vmem>>, vector<1x32x128xbf16>
    %278 = vector.shape_cast %277 : vector<1x32x128xbf16> to vector<32x128xbf16>
    %c0_103 = arith.constant 0 : index
    %c0_104 = arith.constant 0 : index
    %c0_105 = arith.constant 0 : index
    %279 = vector.load %arg7[%c0_103, %c0_104, %c0_105] : memref<1x1x128xf32, #tpu.memory_space<vmem>>, vector<1x1x128xf32>
    %280 = vector.shape_cast %279 : vector<1x1x128xf32> to vector<1x128xf32>
    %281 = arith.truncf %276 : vector<8x32xf32> to vector<8x32xbf16>
    %cst_106 = arith.constant dense<0.000000e+00> : vector<8x128xf32>
    %282 = tpu.matmul %281, %278, %cst_106 {dimension_numbers = #tpu.dot_dimension_numbers<[1], [0], [0], [1], [0, 0, 1, 1], [], []>} : vector<8x32xbf16>, vector<32x128xbf16>, vector<8x128xf32> -> vector<8x128xf32>
    %283 = vector.broadcast %280 : vector<1x128xf32> to vector<8x128xf32>
    %284 = arith.addf %282, %283 : vector<8x128xf32>
    %cst_107 = arith.constant 5.000000e-01 : f32
    %285 = vector.broadcast %cst_107 : f32 to vector<8x128xf32>
    %286 = arith.mulf %285, %284 : vector<8x128xf32>
    %cst_108 = arith.constant 4.471500e-02 : f32
    %287 = vector.broadcast %cst_108 : f32 to vector<8x128xf32>
    %288 = arith.mulf %287, %284 : vector<8x128xf32>
    %289 = arith.mulf %288, %284 : vector<8x128xf32>
    %290 = arith.mulf %289, %284 : vector<8x128xf32>
    %291 = arith.addf %284, %290 : vector<8x128xf32>
    %cst_109 = arith.constant 0.797884583 : f32
    %292 = vector.broadcast %cst_109 : f32 to vector<8x128xf32>
    %293 = arith.mulf %292, %291 : vector<8x128xf32>
    %294 = math.tanh %293 : vector<8x128xf32>
    %cst_110 = arith.constant 1.000000e+00 : f32
    %295 = vector.broadcast %cst_110 : f32 to vector<8x128xf32>
    %296 = arith.addf %295, %294 : vector<8x128xf32>
    %297 = arith.mulf %286, %296 : vector<8x128xf32>
    %c0_111 = arith.constant 0 : index
    %c0_112 = arith.constant 0 : index
    %c0_113 = arith.constant 0 : index
    %298 = vector.load %arg8[%c0_111, %c0_112, %c0_113] : memref<1x128x32xbf16, #tpu.memory_space<vmem>>, vector<1x128x32xbf16>
    %299 = vector.shape_cast %298 : vector<1x128x32xbf16> to vector<128x32xbf16>
    %300 = vector.extract_strided_slice %5 {offsets = [14, 0], sizes = [1, 32], strides = [1, 1]} : vector<16x32xf32> to vector<1x32xf32>
    %301 = arith.truncf %297 : vector<8x128xf32> to vector<8x128xbf16>
    %cst_114 = arith.constant dense<0.000000e+00> : vector<8x32xf32>
    %302 = tpu.matmul %301, %299, %cst_114 {dimension_numbers = #tpu.dot_dimension_numbers<[1], [0], [0], [1], [0, 0, 1, 1], [], []>} : vector<8x128xbf16>, vector<128x32xbf16>, vector<8x32xf32> -> vector<8x32xf32>
    %303 = vector.broadcast %300 : vector<1x32xf32> to vector<8x32xf32>
    %304 = arith.addf %302, %303 : vector<8x32xf32>
    %305 = arith.addf %254, %304 : vector<8x32xf32>
    %c0_115 = arith.constant 0 : index
    %c0_116 = arith.constant 0 : index
    %306 = vector.load %arg12[%c0_115, %c0_116] : memref<8x32xf32, #tpu.memory_space<vmem>>, vector<8x32xf32>
    tpu.vector_store %arg12[%c0_115, %c0_116], %305 {strides = array<i32>} : memref<8x32xf32, #tpu.memory_space<vmem>>, vector<8x32xf32>,
    %c1_i32 = arith.constant 1 : i32
    %307 = arith.cmpi eq, %arg1, %c1_i32 : i32
    %308 = arith.extui %307 : i1 to i32
    %c0_i32_117 = arith.constant 0 : i32
    %309 = arith.cmpi ne, %308, %c0_i32_117 : i32
    scf.if %309 {
      %c0_118 = arith.constant 0 : index
      %c0_119 = arith.constant 0 : index
      %310 = vector.load %arg9[%c0_118, %c0_119] : memref<1x32xf32, #tpu.memory_space<vmem>>, vector<1x32xf32>
      %c0_120 = arith.constant 0 : index
      %c0_121 = arith.constant 0 : index
      %311 = vector.load %arg10[%c0_120, %c0_121] : memref<1x32xf32, #tpu.memory_space<vmem>>, vector<1x32xf32>
      %312 = vector.extract_strided_slice %305 {offsets = [0, 0], sizes = [2, 32], strides = [1, 1]} : vector<8x32xf32> to vector<2x32xf32>
      %cst_122 = arith.constant dense<0.000000e+00> : vector<2xf32>
      %313 = vector.multi_reduction <add>, %312, %cst_122 [1] : vector<2x32xf32> to vector<2xf32>
      %314 = vector.shape_cast %313 : vector<2xf32> to vector<2x1xf32>
      %cst_123 = arith.constant 3.200000e+01 : f32
      %315 = vector.broadcast %cst_123 : f32 to vector<2x1xf32>
      %316 = arith.divf %314, %315 : vector<2x1xf32>
      %317 = vector.broadcast %316 : vector<2x1xf32> to vector<2x32xf32>
      %318 = arith.subf %312, %317 : vector<2x32xf32>
      %319 = arith.mulf %318, %318 : vector<2x32xf32>
      %cst_124 = arith.constant dense<0.000000e+00> : vector<2xf32>
      %320 = vector.multi_reduction <add>, %319, %cst_124 [1] : vector<2x32xf32> to vector<2xf32>
      %321 = vector.shape_cast %320 : vector<2xf32> to vector<2x1xf32>
      %cst_125 = arith.constant 3.200000e+01 : f32
      %322 = vector.broadcast %cst_125 : f32 to vector<2x1xf32>
      %323 = arith.divf %321, %322 : vector<2x1xf32>
      %cst_126 = arith.constant 9.99999974E-6 : f32
      %324 = vector.broadcast %cst_126 : f32 to vector<2x1xf32>
      %325 = arith.addf %323, %324 : vector<2x1xf32>
      %326 = math.rsqrt %325 : vector<2x1xf32>
      %327 = vector.broadcast %326 : vector<2x1xf32> to vector<2x32xf32>
      %328 = arith.mulf %318, %327 : vector<2x32xf32>
      %329 = vector.broadcast %310 : vector<1x32xf32> to vector<2x32xf32>
      %330 = arith.mulf %328, %329 : vector<2x32xf32>
      %331 = vector.broadcast %311 : vector<1x32xf32> to vector<2x32xf32>
      %332 = arith.addf %330, %331 : vector<2x32xf32>
      %c0_127 = arith.constant 0 : index
      %c0_128 = arith.constant 0 : index
      %c0_129 = arith.constant 0 : index
      %333 = vector.load %arg11[%c0_127, %c0_128, %c0_129] : memref<1x2x32xf32, #tpu.memory_space<vmem>>, vector<1x2x32xf32>
      %334 = vector.shape_cast %333 : vector<1x2x32xf32> to vector<2x32xf32>
      %335 = vector.shape_cast %332 : vector<2x32xf32> to vector<1x2x32xf32>
      tpu.vector_store %arg11[%c0_127, %c0_128, %c0_129], %335 {strides = array<i32>} : memref<1x2x32xf32, #tpu.memory_space<vmem>>, vector<1x2x32xf32>,
    } else {
    }
    return
  }
  func.func @transform_0(%arg0: i32, %arg1: i32) -> (i32, i32) {
    %c0_i32 = arith.constant 0 : i32
    %c0_i32_0 = arith.constant 0 : i32
    return %arg0, %c0_i32 : i32, i32
  }
  func.func @transform_1(%arg0: i32, %arg1: i32) -> (i32, i32, i32) {
    %c0_i32 = arith.constant 0 : i32
    %c0_i32_0 = arith.constant 0 : i32
    %c0_i32_1 = arith.constant 0 : i32
    return %arg0, %c0_i32, %c0_i32_0 : i32, i32, i32
  }
  func.func @transform_2(%arg0: i32, %arg1: i32) -> (i32, i32, i32) {
    %c0_i32 = arith.constant 0 : i32
    %c0_i32_0 = arith.constant 0 : i32
    %c0_i32_1 = arith.constant 0 : i32
    return %arg1, %c0_i32, %c0_i32_0 : i32, i32, i32
  }
  func.func @transform_3(%arg0: i32, %arg1: i32) -> (i32, i32, i32) {
    %c0_i32 = arith.constant 0 : i32
    %c0_i32_0 = arith.constant 0 : i32
    %c0_i32_1 = arith.constant 0 : i32
    return %arg1, %c0_i32, %c0_i32_0 : i32, i32, i32
  }
  func.func @transform_4(%arg0: i32, %arg1: i32) -> (i32, i32, i32) {
    %c0_i32 = arith.constant 0 : i32
    %c0_i32_0 = arith.constant 0 : i32
    %c0_i32_1 = arith.constant 0 : i32
    return %arg1, %c0_i32, %c0_i32_0 : i32, i32, i32
  }
  func.func @transform_5(%arg0: i32, %arg1: i32) -> (i32, i32, i32) {
    %c0_i32 = arith.constant 0 : i32
    %c0_i32_0 = arith.constant 0 : i32
    %c0_i32_1 = arith.constant 0 : i32
    return %arg1, %c0_i32, %c0_i32_0 : i32, i32, i32
  }
  func.func @transform_6(%arg0: i32, %arg1: i32) -> (i32, i32, i32) {
    %c0_i32 = arith.constant 0 : i32
    %c0_i32_0 = arith.constant 0 : i32
    %c0_i32_1 = arith.constant 0 : i32
    return %arg1, %c0_i32, %c0_i32_0 : i32, i32, i32
  }
  func.func @transform_7(%arg0: i32, %arg1: i32) -> (i32, i32) {
    %c0_i32 = arith.constant 0 : i32
    %c0_i32_0 = arith.constant 0 : i32
    %c0_i32_1 = arith.constant 0 : i32
    return %c0_i32, %c0_i32_0 : i32, i32
  }
  func.func @transform_8(%arg0: i32, %arg1: i32) -> (i32, i32) {
    %c0_i32 = arith.constant 0 : i32
    %c0_i32_0 = arith.constant 0 : i32
    %c0_i32_1 = arith.constant 0 : i32
    return %c0_i32, %c0_i32_0 : i32, i32
  }
  func.func @transform_9(%arg0: i32, %arg1: i32) -> (i32, i32, i32) {
    %c0_i32 = arith.constant 0 : i32
    %c0_i32_0 = arith.constant 0 : i32
    %c0_i32_1 = arith.constant 0 : i32
    return %arg0, %c0_i32, %c0_i32_0 : i32, i32, i32
  }
}

</mosaic_0001>

<llo_original>
// kernel: tpu_custom_call.1
$region0: #{tpu_custom_call.1}
  #allocation0 [shape = 'u32[]', space=smem, size = 0x4, offset = 0x4, fixed_abs, tag = 'smem constant byte address 0x4 - core index']
  #allocation1 [shape = 'u32[72,128]{1,0:T(1,128)}', space=vmem, size = 0x9000, scoped, tag = 'internal scratch']
  #allocation2 [shape = 'f32[8,32]{1,0:T(8,128)}', space=vmem, size = 0x1000, scoped, tag = 'scratch operand']
  #allocation3 [shape = 'f32[8,32]{1,0:T(8,128)}', space=vmem, size = 0x1000, scoped, tag = 'scratch operand']
  %s0 = inlined_call_operand.vmem [shape: f32[16,32], index: 0, kind: input, shape index: {}]
  %s1 = inlined_call_operand.vmem [shape: bf16[2,8,32], index: 1, kind: input, shape index: {}]
  %s2 = inlined_call_operand.vmem [shape: f32[2,16,32], index: 2, kind: input, shape index: {}]
  %s3 = inlined_call_operand.vmem [shape: bf16[2,256,32], index: 3, kind: input, shape index: {}]
  %s4 = inlined_call_operand.vmem [shape: bf16[2,32,128], index: 4, kind: input, shape index: {}]
  %s5 = inlined_call_operand.vmem [shape: f32[2,1,128], index: 5, kind: input, shape index: {}]
  %s6 = inlined_call_operand.vmem [shape: bf16[2,128,32], index: 6, kind: input, shape index: {}]
  %s7 = inlined_call_operand.vmem [shape: f32[1,32], index: 7, kind: input, shape index: {}]
  %s8 = inlined_call_operand.vmem [shape: f32[1,32], index: 8, kind: input, shape index: {}]
  %s9 = inlined_call_operand.hbm [shape: f32[2,2,32], index: 9, kind: output, shape index: {}]
  %s10 = sld [smem:[#allocation0]]
  $region77: #{tpu_custom_call.1} parent=0
    _
  %s12 = ssub.s32 1, %s10
  %s13 = scalar_select 0, %s12, %s10
  $region1: #{tpu_custom_call.1} parent=0
    #allocation4 [shape = 'u8[2048]{0}', space=vmem, size = 0x800, scoped, tag = 'output window, operand 0']
    #allocation5 [shape = 's32[2]{0}', space=sflag, size = 0x8, scoped, tag = 'scoped memory for tpu_custom_call.1']
    %14 = vsyncpa [#allocation5], 0
    %s15 = scalar_lea.sflag [#allocation5], 1
    %16 = vsyncpa %s15, 0
    loop: start=0, step=1, limit=6
    $region2: #{tpu_custom_call.1} parent=1 // loop_pre_header
      _
    $region3: #{tpu_custom_call.1} parent=1 // loop_header
      %s18 = sphi 0, %s22
      %p19 = scmp.ge.s32.totalorder %s18, 6
      %s25 = sphi 0, %s37
      %s26 = sphi 0, %s33
      %s27 = sphi 0, %s25
      %s28 = sphi 0, %s26
      %s29 = sphi 0, %s27
      %s30 = sphi 0, %s28
      %s40 = sphi 0, %s42
      %s43 = sphi 0, %s40
      %s44 = sphi 0, %s43
      %s60 = sphi 0, %s44
      %s66 = sphi 0, %s68
      %s69 = sphi 0, %s66
      %s70 = sphi 0, %s69
      %s86 = sphi 0, %s70
      %s92 = sphi 0, %s94
      %s95 = sphi 0, %s92
      %s96 = sphi 0, %s95
      %s112 = sphi 0, %s96
      %s118 = sphi 0, %s120
      %s121 = sphi 0, %s118
      %s122 = sphi 0, %s121
      %s138 = sphi 0, %s122
      %s144 = sphi 0, %s146
      %s147 = sphi 0, %s144
      %s148 = sphi 0, %s147
      %s164 = sphi 0, %s148
      %s170 = sphi 0, %s172
      %s173 = sphi 0, %s170
      %s174 = sphi 0, %s173
      %s190 = sphi 0, %s174
      %s196 = sphi 0, %s198
      %s199 = sphi 0, %s196
      %s200 = sphi 0, %s199
      %s216 = sphi 0, %s200
      %s220 = sphi 0, %s220
      %s222 = sphi 0, %s220
      %s223 = sphi 0, %s222
      %s237 = sphi 0, %s223
      %s241 = sphi 0, %s241
      %s243 = sphi 0, %s241
      %s244 = sphi 0, %s243
      %s258 = sphi 0, %s244
      %s264 = sphi 0, %s266
      %s267 = sphi 0, %s264
      %s268 = sphi 0, %s267
      %s284 = sphi 0, %s268
    $region4: #{tpu_custom_call.1} parent=1 // loop_header_branch
      %21 = sbr.rel (%p19) target = $region8
    $region5: #{tpu_custom_call.1} parent=1 // loop_body
      %s23 = ssub.s32 %s18, 1
      %s24 = ssub.s32 %s18, 2
      %s31 = sadd.s32 1, %s26
      %p32 = scmp.ge.s32.totalorder %s31, 2
      %s33 = scalar_select %p32, 0, %s31
      %s34 = sadd.s32 1, %s25
      %s35 = scalar_select %p32, %s34, %s25
      %p36 = scmp.ge.s32.totalorder %s35, 2
      %s37 = scalar_select %p36, 0, %s35
      %s38 = ssub.s32 %s25, %s37
      %p39 = scmp.eq.s32.totalorder %s38, 0
      %s41 = sadd.s32 %s40, 1
      %s42 = scalar_select %p39, %s40, %s41
      %p45 = pneg %p39
      %p46 = scmp.eq.s32.totalorder %s18, 3
      %p47 = por %p45, %p46
      %p48 = scmp.ne.s32.totalorder %s40, %s43
      %p49 = scmp.eq.s32.totalorder %s18, 0
      %p50 = por %p48, %p49
      %p51 = scmp.ne.s32.totalorder %s40, %s43
      %p52 = scmp.eq.s32.totalorder %s23, 3
      %p53 = por %p51, %p52
      %p54 = scmp.ne.s32.totalorder %s43, %s44
      %p55 = scmp.eq.s32.totalorder %s23, 0
      %p56 = por %p54, %p55
      %p57 = scmp.ne.s32.totalorder %s43, %s44
      %p58 = scmp.eq.s32.totalorder %s24, 3
      %p59 = por %p57, %p58
      %p61 = scmp.ne.s32.totalorder %s44, %s60
      %p62 = scmp.eq.s32.totalorder %s24, 0
      %p63 = por %p61, %p62
      %s64 = ssub.s32 %s25, %s37
      %p65 = scmp.eq.s32.totalorder %s64, 0
      %s67 = sadd.s32 %s66, 1
      %s68 = scalar_select %p65, %s66, %s67
      %p71 = pneg %p65
      %p72 = scmp.eq.s32.totalorder %s18, 3
      %p73 = por %p71, %p72
      %p74 = scmp.ne.s32.totalorder %s66, %s69
      %p75 = scmp.eq.s32.totalorder %s18, 0
      %p76 = por %p74, %p75
      %p77 = scmp.ne.s32.totalorder %s66, %s69
      %p78 = scmp.eq.s32.totalorder %s23, 3
      %p79 = por %p77, %p78
      %p80 = scmp.ne.s32.totalorder %s69, %s70
      %p81 = scmp.eq.s32.totalorder %s23, 0
      %p82 = por %p80, %p81
      %p83 = scmp.ne.s32.totalorder %s69, %s70
      %p84 = scmp.eq.s32.totalorder %s24, 3
      %p85 = por %p83, %p84
      %p87 = scmp.ne.s32.totalorder %s70, %s86
      %p88 = scmp.eq.s32.totalorder %s24, 0
      %p89 = por %p87, %p88
      %s90 = ssub.s32 %s26, %s33
      %p91 = scmp.eq.s32.totalorder %s90, 0
      %s93 = sadd.s32 %s92, 1
      %s94 = scalar_select %p91, %s92, %s93
      %p97 = pneg %p91
      %p98 = scmp.eq.s32.totalorder %s18, 3
      %p99 = por %p97, %p98
      %p100 = scmp.ne.s32.totalorder %s92, %s95
      %p101 = scmp.eq.s32.totalorder %s18, 0
      %p102 = por %p100, %p101
      %p103 = scmp.ne.s32.totalorder %s92, %s95
      %p104 = scmp.eq.s32.totalorder %s23, 3
      %p105 = por %p103, %p104
      %p106 = scmp.ne.s32.totalorder %s95, %s96
      %p107 = scmp.eq.s32.totalorder %s23, 0
      %p108 = por %p106, %p107
      %p109 = scmp.ne.s32.totalorder %s95, %s96
      %p110 = scmp.eq.s32.totalorder %s24, 3
      %p111 = por %p109, %p110
      %p113 = scmp.ne.s32.totalorder %s96, %s112
      %p114 = scmp.eq.s32.totalorder %s24, 0
      %p115 = por %p113, %p114
      %s116 = ssub.s32 %s26, %s33
      %p117 = scmp.eq.s32.totalorder %s116, 0
      %s119 = sadd.s32 %s118, 1
      %s120 = scalar_select %p117, %s118, %s119
      %p123 = pneg %p117
      %p124 = scmp.eq.s32.totalorder %s18, 3
      %p125 = por %p123, %p124
      %p126 = scmp.ne.s32.totalorder %s118, %s121
      %p127 = scmp.eq.s32.totalorder %s18, 0
      %p128 = por %p126, %p127
      %p129 = scmp.ne.s32.totalorder %s118, %s121
      %p130 = scmp.eq.s32.totalorder %s23, 3
      %p131 = por %p129, %p130
      %p132 = scmp.ne.s32.totalorder %s121, %s122
      %p133 = scmp.eq.s32.totalorder %s23, 0
      %p134 = por %p132, %p133
      %p135 = scmp.ne.s32.totalorder %s121, %s122
      %p136 = scmp.eq.s32.totalorder %s24, 3
      %p137 = por %p135, %p136
      %p139 = scmp.ne.s32.totalorder %s122, %s138
      %p140 = scmp.eq.s32.totalorder %s24, 0
      %p141 = por %p139, %p140
      %s142 = ssub.s32 %s26, %s33
      %p143 = scmp.eq.s32.totalorder %s142, 0
      %s145 = sadd.s32 %s144, 1
      %s146 = scalar_select %p143, %s144, %s145
      %p149 = pneg %p143
      %p150 = scmp.eq.s32.totalorder %s18, 3
      %p151 = por %p149, %p150
      %p152 = scmp.ne.s32.totalorder %s144, %s147
      %p153 = scmp.eq.s32.totalorder %s18, 0
      %p154 = por %p152, %p153
      %p155 = scmp.ne.s32.totalorder %s144, %s147
      %p156 = scmp.eq.s32.totalorder %s23, 3
      %p157 = por %p155, %p156
      %p158 = scmp.ne.s32.totalorder %s147, %s148
      %p159 = scmp.eq.s32.totalorder %s23, 0
      %p160 = por %p158, %p159
      %p161 = scmp.ne.s32.totalorder %s147, %s148
      %p162 = scmp.eq.s32.totalorder %s24, 3
      %p163 = por %p161, %p162
      %p165 = scmp.ne.s32.totalorder %s148, %s164
      %p166 = scmp.eq.s32.totalorder %s24, 0
      %p167 = por %p165, %p166
      %s168 = ssub.s32 %s26, %s33
      %p169 = scmp.eq.s32.totalorder %s168, 0
      %s171 = sadd.s32 %s170, 1
      %s172 = scalar_select %p169, %s170, %s171
      %p175 = pneg %p169
      %p176 = scmp.eq.s32.totalorder %s18, 3
      %p177 = por %p175, %p176
      %p178 = scmp.ne.s32.totalorder %s170, %s173
      %p179 = scmp.eq.s32.totalorder %s18, 0
      %p180 = por %p178, %p179
      %p181 = scmp.ne.s32.totalorder %s170, %s173
      %p182 = scmp.eq.s32.totalorder %s23, 3
      %p183 = por %p181, %p182
      %p184 = scmp.ne.s32.totalorder %s173, %s174
      %p185 = scmp.eq.s32.totalorder %s23, 0
      %p186 = por %p184, %p185
      %p187 = scmp.ne.s32.totalorder %s173, %s174
      %p188 = scmp.eq.s32.totalorder %s24, 3
      %p189 = por %p187, %p188
      %p191 = scmp.ne.s32.totalorder %s174, %s190
      %p192 = scmp.eq.s32.totalorder %s24, 0
      %p193 = por %p191, %p192
      %s194 = ssub.s32 %s26, %s33
      %p195 = scmp.eq.s32.totalorder %s194, 0
      %s197 = sadd.s32 %s196, 1
      %s198 = scalar_select %p195, %s196, %s197
      %p201 = pneg %p195
      %p202 = scmp.eq.s32.totalorder %s18, 3
      %p203 = por %p201, %p202
      %p204 = scmp.ne.s32.totalorder %s196, %s199
      %p205 = scmp.eq.s32.totalorder %s18, 0
      %p206 = por %p204, %p205
      %p207 = scmp.ne.s32.totalorder %s196, %s199
      %p208 = scmp.eq.s32.totalorder %s23, 3
      %p209 = por %p207, %p208
      %p210 = scmp.ne.s32.totalorder %s199, %s200
      %p211 = scmp.eq.s32.totalorder %s23, 0
      %p212 = por %p210, %p211
      %p213 = scmp.ne.s32.totalorder %s199, %s200
      %p214 = scmp.eq.s32.totalorder %s24, 3
      %p215 = por %p213, %p214
      %p217 = scmp.ne.s32.totalorder %s200, %s216
      %p218 = scmp.eq.s32.totalorder %s24, 0
      %p219 = por %p217, %p218
      %s221 = sadd.s32 %s220, 1
      %p224 = scmp.eq.s32.totalorder %s18, 3
      %p225 = scmp.ne.s32.totalorder %s220, %s222
      %p226 = scmp.eq.s32.totalorder %s18, 0
      %p227 = por %p225, %p226
      %p228 = scmp.ne.s32.totalorder %s220, %s222
      %p229 = scmp.eq.s32.totalorder %s23, 3
      %p230 = por %p228, %p229
      %p231 = scmp.ne.s32.totalorder %s222, %s223
      %p232 = scmp.eq.s32.totalorder %s23, 0
      %p233 = por %p231, %p232
      %p234 = scmp.ne.s32.totalorder %s222, %s223
      %p235 = scmp.eq.s32.totalorder %s24, 3
      %p236 = por %p234, %p235
      %p238 = scmp.ne.s32.totalorder %s223, %s237
      %p239 = scmp.eq.s32.totalorder %s24, 0
      %p240 = por %p238, %p239
      %s242 = sadd.s32 %s241, 1
      %p245 = scmp.eq.s32.totalorder %s18, 3
      %p246 = scmp.ne.s32.totalorder %s241, %s243
      %p247 = scmp.eq.s32.totalorder %s18, 0
      %p248 = por %p246, %p247
      %p249 = scmp.ne.s32.totalorder %s241, %s243
      %p250 = scmp.eq.s32.totalorder %s23, 3
      %p251 = por %p249, %p250
      %p252 = scmp.ne.s32.totalorder %s243, %s244
      %p253 = scmp.eq.s32.totalorder %s23, 0
      %p254 = por %p252, %p253
      %p255 = scmp.ne.s32.totalorder %s243, %s244
      %p256 = scmp.eq.s32.totalorder %s24, 3
      %p257 = por %p255, %p256
      %p259 = scmp.ne.s32.totalorder %s244, %s258
      %p260 = scmp.eq.s32.totalorder %s24, 0
      %p261 = por %p259, %p260
      %s262 = ssub.s32 %s25, %s37
      %p263 = scmp.eq.s32.totalorder %s262, 0
      %s265 = sadd.s32 %s264, 1
      %s266 = scalar_select %p263, %s264, %s265
      %p269 = pneg %p263
      %p270 = scmp.eq.s32.totalorder %s18, 3
      %p271 = por %p269, %p270
      %p272 = scmp.ne.s32.totalorder %s264, %s267
      %p273 = scmp.eq.s32.totalorder %s18, 0
      %p274 = por %p272, %p273
      %p275 = scmp.ne.s32.totalorder %s264, %s267
      %p276 = scmp.eq.s32.totalorder %s23, 3
      %p277 = por %p275, %p276
      %p278 = scmp.ne.s32.totalorder %s267, %s268
      %p279 = scmp.eq.s32.totalorder %s23, 0
      %p280 = por %p278, %p279
      %p281 = scmp.ne.s32.totalorder %s267, %s268
      %p282 = scmp.eq.s32.totalorder %s24, 3
      %p283 = por %p281, %p282
      %p285 = scmp.ne.s32.totalorder %s268, %s284
      %p286 = scmp.eq.s32.totalorder %s24, 0
      %p287 = por %p285, %p286
      %p288 = scmp.le.s32.totalorder 1, %s18
      %p289 = scmp.lt.s32.totalorder %s18, 5
      %p290 = pnand %p288, %p289
      %p291 = pneg %p290
      // Predicated region
      $region9: #{tpu_custom_call.1} parent=5 // pred_check
        _
      $region10: #{tpu_custom_call.1} parent=5 // pred_check_branch
        %293 = sbr.rel (%p290) target = $region12
      $region11: #{tpu_custom_call.1} parent=5 // pred_region
        %s294 = ssub.s32 %s18, 1
        // Predicated region
        $region13: #{tpu_custom_call.1} parent=11 // pred_check
          %p295 = pneg %p233
        $region14: #{tpu_custom_call.1} parent=11 // pred_check_branch
          %297 = sbr.rel (%p295) target = $region16
        $region15: #{tpu_custom_call.1} parent=11 // pred_region
          _
        $region16: #{tpu_custom_call.1} parent=11 // pred_fallthru
          _
        // Predicated region
        $region17: #{tpu_custom_call.1} parent=11 // pred_check
          %p298 = pneg %p254
        $region18: #{tpu_custom_call.1} parent=11 // pred_check_branch
          %300 = sbr.rel (%p298) target = $region20
        $region19: #{tpu_custom_call.1} parent=11 // pred_region
          _
        $region20: #{tpu_custom_call.1} parent=11 // pred_fallthru
          _
      $region12: #{tpu_custom_call.1} parent=5 // pred_fallthru
        _
      %p301 = scmp.lt.s32.totalorder %s18, 4
      // Predicated region
      $region21: #{tpu_custom_call.1} parent=5 // pred_check
        %p302 = pneg %p301
      $region22: #{tpu_custom_call.1} parent=5 // pred_check_branch
        %304 = sbr.rel (%p302) target = $region24
      $region23: #{tpu_custom_call.1} parent=5 // pred_region
        // Predicated region
        $region25: #{tpu_custom_call.1} parent=23 // pred_check
          %p305 = pneg %p50
        $region26: #{tpu_custom_call.1} parent=23 // pred_check_branch
          %307 = sbr.rel (%p305) target = $region28
        $region27: #{tpu_custom_call.1} parent=23 // pred_region
          %p308 = scmp.lt.s32.totalorder %s25, 1
          %s309 = scalar_select %p308, %s25, 1
          %s310 = smul.addr %s309, 8
          %s311 = scalar_lea.vmem %s0, %s310
        $region28: #{tpu_custom_call.1} parent=23 // pred_fallthru
          _
        // Predicated region
        $region29: #{tpu_custom_call.1} parent=23 // pred_check
          %p312 = pneg %p76
        $region30: #{tpu_custom_call.1} parent=23 // pred_check_branch
          %314 = sbr.rel (%p312) target = $region32
        $region31: #{tpu_custom_call.1} parent=23 // pred_region
          %p315 = scmp.lt.s32.totalorder %s25, 1
          %s316 = scalar_select %p315, %s25, 1
          %s317 = smul.addr %s316, 4
          %s318 = scalar_lea.vmem %s1, %s317
        $region32: #{tpu_custom_call.1} parent=23 // pred_fallthru
          _
        // Predicated region
        $region33: #{tpu_custom_call.1} parent=23 // pred_check
          %p319 = pneg %p102
        $region34: #{tpu_custom_call.1} parent=23 // pred_check_branch
          %321 = sbr.rel (%p319) target = $region36
        $region35: #{tpu_custom_call.1} parent=23 // pred_region
          %p322 = scmp.lt.s32.totalorder %s26, 1
          %s323 = scalar_select %p322, %s26, 1
          %s324 = smul.addr %s323, 2
          %s325 = smul.addr %s324, 8
          %s326 = scalar_lea.vmem %s2, %s325
        $region36: #{tpu_custom_call.1} parent=23 // pred_fallthru
          _
        // Predicated region
        $region37: #{tpu_custom_call.1} parent=23 // pred_check
          %p327 = pneg %p128
        $region38: #{tpu_custom_call.1} parent=23 // pred_check_branch
          %329 = sbr.rel (%p327) target = $region40
        $region39: #{tpu_custom_call.1} parent=23 // pred_region
          %p330 = scmp.lt.s32.totalorder %s26, 1
          %s331 = scalar_select %p330, %s26, 1
          %s332 = smul.addr %s331, 32
          %s333 = smul.addr %s332, 4
          %s334 = scalar_lea.vmem %s3, %s333
        $region40: #{tpu_custom_call.1} parent=23 // pred_fallthru
          _
        // Predicated region
        $region41: #{tpu_custom_call.1} parent=23 // pred_check
          %p335 = pneg %p154
        $region42: #{tpu_custom_call.1} parent=23 // pred_check_branch
          %337 = sbr.rel (%p335) target = $region44
        $region43: #{tpu_custom_call.1} parent=23 // pred_region
          %p338 = scmp.lt.s32.totalorder %s26, 1
          %s339 = scalar_select %p338, %s26, 1
          %s340 = smul.addr %s339, 4
          %s341 = smul.addr %s340, 4
          %s342 = scalar_lea.vmem %s4, %s341
        $region44: #{tpu_custom_call.1} parent=23 // pred_fallthru
          _
        // Predicated region
        $region45: #{tpu_custom_call.1} parent=23 // pred_check
          %p343 = pneg %p180
        $region46: #{tpu_custom_call.1} parent=23 // pred_check_branch
          %345 = sbr.rel (%p343) target = $region48
        $region47: #{tpu_custom_call.1} parent=23 // pred_region
          %p346 = scmp.lt.s32.totalorder %s26, 1
          %s347 = scalar_select %p346, %s26, 1
          %s348 = scalar_lea.vmem %s5, %s347
        $region48: #{tpu_custom_call.1} parent=23 // pred_fallthru
          _
        // Predicated region
        $region49: #{tpu_custom_call.1} parent=23 // pred_check
          %p349 = pneg %p206
        $region50: #{tpu_custom_call.1} parent=23 // pred_check_branch
          %351 = sbr.rel (%p349) target = $region52
        $region51: #{tpu_custom_call.1} parent=23 // pred_region
          %p352 = scmp.lt.s32.totalorder %s26, 1
          %s353 = scalar_select %p352, %s26, 1
          %s354 = smul.addr %s353, 16
          %s355 = smul.addr %s354, 4
          %s356 = scalar_lea.vmem %s6, %s355
        $region52: #{tpu_custom_call.1} parent=23 // pred_fallthru
          _
      $region24: #{tpu_custom_call.1} parent=5 // pred_fallthru
        _
      %p357 = scmp.le.s32.totalorder 1, %s18
      %p358 = scmp.lt.s32.totalorder %s18, 5
      %p359 = pnand %p357, %p358
      %p360 = pneg %p359
      // Predicated region
      $region53: #{tpu_custom_call.1} parent=5 // pred_check
        _
      $region54: #{tpu_custom_call.1} parent=5 // pred_check_branch
        %362 = sbr.rel (%p359) target = $region56
      $region55: #{tpu_custom_call.1} parent=5 // pred_region
        %s363 = ssub.s32 %s18, 1
        %p364 = scmp.lt.s32.totalorder %s27, 1
        %s365 = scalar_select %p364, %s27, 1
        %s366 = smul.addr %s365, 8
        %s367 = scalar_lea.vmem %s0, %s366
        %p368 = pneg %p56
        %p369 = pneg %p53
        %p370 = scmp.lt.s32.totalorder %s27, 1
        %s371 = scalar_select %p370, %s27, 1
        %s372 = smul.addr %s371, 4
        %s373 = scalar_lea.vmem %s1, %s372
        %p374 = pneg %p82
        %p375 = pneg %p79
        %p376 = scmp.lt.s32.totalorder %s28, 1
        %s377 = scalar_select %p376, %s28, 1
        %s378 = smul.addr %s377, 2
        %s379 = smul.addr %s378, 8
        %s380 = scalar_lea.vmem %s2, %s379
        %p381 = pneg %p108
        %p382 = pneg %p105
        %p383 = scmp.lt.s32.totalorder %s28, 1
        %s384 = scalar_select %p383, %s28, 1
        %s385 = smul.addr %s384, 32
        %s386 = smul.addr %s385, 4
        %s387 = scalar_lea.vmem %s3, %s386
        %p388 = pneg %p134
        %p389 = pneg %p131
        %p390 = scmp.lt.s32.totalorder %s28, 1
        %s391 = scalar_select %p390, %s28, 1
        %s392 = smul.addr %s391, 4
        %s393 = smul.addr %s392, 4
        %s394 = scalar_lea.vmem %s4, %s393
        %p395 = pneg %p160
        %p396 = pneg %p157
        %p397 = scmp.lt.s32.totalorder %s28, 1
        %s398 = scalar_select %p397, %s28, 1
        %s399 = scalar_lea.vmem %s5, %s398
        %p400 = pneg %p186
        %p401 = pneg %p183
        %p402 = scmp.lt.s32.totalorder %s28, 1
        %s403 = scalar_select %p402, %s28, 1
        %s404 = smul.addr %s403, 16
        %s405 = smul.addr %s404, 4
        %s406 = scalar_lea.vmem %s6, %s405
        %p407 = pneg %p212
        %p408 = pneg %p209
        %p409 = pneg %p233
        %p410 = pneg %p230
        %p411 = pneg %p254
        %p412 = pneg %p251
        %p413 = pneg %p280
        %p414 = pneg %p277
        %s415 = sand.u32 %s267, 1
        %s416 = scalar_lea.sflag [#allocation5], %s415
        %s417 = sand.u32 %s267, 1
        %s418 = smul.addr %s417, 2
        %s419 = scalar_lea.vmem [#allocation4], %s418
        %p420 = scmp.lt.s32.totalorder %s27, 1
        %s421 = scalar_select %p420, %s27, 1
        %s422 = smul.addr %s421, 8
        %s423 = scalar_lea.vmem %s0, %s422
        %p424 = scmp.lt.s32.totalorder %s27, 1
        %s425 = scalar_select %p424, %s27, 1
        %s426 = smul.addr %s425, 4
        %s427 = scalar_lea.vmem %s1, %s426
        %p428 = scmp.lt.s32.totalorder %s28, 1
        %s429 = scalar_select %p428, %s28, 1
        %s430 = smul.addr %s429, 2
        %s431 = smul.addr %s430, 8
        %s432 = scalar_lea.vmem %s2, %s431
        %p433 = scmp.lt.s32.totalorder %s28, 1
        %s434 = scalar_select %p433, %s28, 1
        %s435 = smul.addr %s434, 32
        %s436 = smul.addr %s435, 4
        %s437 = scalar_lea.vmem %s3, %s436
        %p438 = scmp.lt.s32.totalorder %s28, 1
        %s439 = scalar_select %p438, %s28, 1
        %s440 = smul.addr %s439, 4
        %s441 = smul.addr %s440, 4
        %s442 = scalar_lea.vmem %s4, %s441
        %p443 = scmp.lt.s32.totalorder %s28, 1
        %s444 = scalar_select %p443, %s28, 1
        %s445 = scalar_lea.vmem %s5, %s444
        %p446 = scmp.lt.s32.totalorder %s28, 1
        %s447 = scalar_select %p446, %s28, 1
        %s448 = smul.addr %s447, 16
        %s449 = smul.addr %s448, 4
        %s450 = scalar_lea.vmem %s6, %s449
        %p452 = scmp.eq.s32.totalorder %s28, 0
        // Predicated region
        $region57: #{tpu_custom_call.1} parent=55 // pred_check
          %p453 = pneg %p452
        $region58: #{tpu_custom_call.1} parent=55 // pred_check_branch
          %455 = sbr.rel (%p453) target = $region60
        $region59: #{tpu_custom_call.1} parent=55 // pred_region
          %v456 = vld [vmem:[%s423] sm:$0xff]
          %vm457 = vcmask 261120
          %458 = vst.msk [vmem:[#allocation2] sm:$0xff] %vm457, %v456
        $region60: #{tpu_custom_call.1} parent=55 // pred_fallthru
          _
        %v459 = vld [vmem:[#allocation2] sm:$0xff]
        %v460 = vld [vmem:[%s432] sm:$0xff]
        %v461 = vld [vmem:[%s432 + $0x8] sm:$0xff]
        %v462 = vlaneseq
        %v463 = vshrl.u32 %v462, 7
        %v464 = vlaneseq
        %v465 = vand.u32 %v464, 127
        %vm466 = vcmp.lt.s32.totalorder %v465, 3
        %vm467 = vcmp.le.s32.totalorder %v465, %v463
        %vm468 = vmand %vm466, %vm467
        %v469 = vsel %vm468, 0.0, -1e+30
        %vm470 = vcmask 261120
        %v471 = vsel %vm470, %v459, 0.0
        %472 = vadd.xlane.f32.xlu0 %v471
        %v473 = vpop.xlane.xlu0 %472
        %v474 = vrcp.pop 32.0
        %v475 = vmul.f32 32.0, %v474
        %v476 = vsub.f32 1.0, %v475
        %v477 = vmul.f32 %v474, %v476
        %v478 = vadd.f32 %v474, %v477
        %vm479 = vweird.f32 %v474
        %v480 = vsel %vm479, %v474, %v478
        %v481 = vmul.f32 %v473, %v480
        %v482 = vsub.f32 %v459, %v481
        %v483 = vmul.f32 %v482, %v482
        %v484 = vsel %vm470, %v483, 0.0
        %485 = vadd.xlane.f32.xlu0 %v484
        %v486 = vpop.xlane.xlu0 %485
        %v487 = vmul.f32 %v486, %v480
        %v488 = vadd.f32 %v487, 1e-05
        %v489 = vrsqrt.pop %v488
        %v490 = vmul.f32 %v489, %v488
        %v491 = vmul.f32 %v490, %v489
        %v492 = vmul.f32 0.5, %v491
        %v493 = vsub.f32 1.5, %v492
        %v494 = vmul.f32 %v489, %v493
        %vm495 = vweird.f32 %v488
        %vm496 = vweird.f32 %v489
        %vm497 = vmor %vm495, %vm496
        %v498 = vsel %vm497, %v489, %v494
        %v499 = vmul.f32 %v482, %v498
        %v500 = vperm.slane %v460, 0
        %v501 = vmul.f32 %v499, %v500
        %v502 = vperm.slane %v460, 1
        %v503 = vadd.f32 %v501, %v502
        %v504 = vld [vmem:[%s437] sm:$0xf]
        %v505 = vld [vmem:[%s437 + $0x4] sm:$0xf]
        %v506 = vld [vmem:[%s437 + $0x8] sm:$0xf]
        %v507 = vld [vmem:[%s437 + $0xc] sm:$0xf]
        %v508 = vpack.c.bf16 %v503, %v503
        %v509 = vperm.slane %v460, 6
        %v514 = vunpack.c.l.b16 %v504
        %v515 = vunpack.c.l.b16 %v505
        %v516 = vunpack.c.l.b16 %v506
        %v517 = vunpack.c.l.b16 %v507
        %v518 = vpack.c.b16 %v515, %v514
        %v519 = vpack.c.b16 %v517, %v516
        %v523 = vsel %vm470, %v508, 0
        %525 = vmatpush.bf16.msra.mxu0 0
        %526 = vmatpush.bf16.msra.mxu0 0
        %527 = vmatpush.bf16.msra.mxu0 0
        %528 = vmatpush.bf16.msra.mxu0 0
        %529 = vmatpush.bf16.msra.mxu0 0
        %530 = vmatpush.bf16.msra.mxu0 0
        %531 = vmatpush.bf16.msra.mxu0 %v519
        %532 = vmatpush.bf16.msra.mxu0 %v518
        %533 = vmatmul.bf16.gmra.mxu0 %v523
        %v534 = vpop.f32.mrf.mxu0
        %v535 = vadd.f32 %v509, %v534
        %v536 = vpop.f32.mrf.mxu0
        %537 = vdwg.mxu0
        %v538 = vmul.f32 %v535, 0.35355338
        %v539 = vld [vmem:[%s437 + $0x10] sm:$0xf]
        %v540 = vld [vmem:[%s437 + $0x14] sm:$0xf]
        %v541 = vld [vmem:[%s437 + $0x18] sm:$0xf]
        %v542 = vld [vmem:[%s437 + $0x1c] sm:$0xf]
        %v543 = vperm.slane %v460, 7
        %v548 = vunpack.c.l.b16 %v539
        %v549 = vunpack.c.l.b16 %v540
        %v550 = vunpack.c.l.b16 %v541
        %v551 = vunpack.c.l.b16 %v542
        %v552 = vpack.c.b16 %v549, %v548
        %v553 = vpack.c.b16 %v551, %v550
        %556 = vmatpush.bf16.msra.mxu0 0
        %557 = vmatpush.bf16.msra.mxu0 0
        %558 = vmatpush.bf16.msra.mxu0 0
        %559 = vmatpush.bf16.msra.mxu0 0
        %560 = vmatpush.bf16.msra.mxu0 0
        %561 = vmatpush.bf16.msra.mxu0 0
        %562 = vmatpush.bf16.msra.mxu0 %v553
        %563 = vmatpush.bf16.msra.mxu0 %v552
        %564 = vmatmul.bf16.gmra.mxu0 %v523
        %v565 = vpop.f32.mrf.mxu0
        %v566 = vadd.f32 %v543, %v565
        %v567 = vpop.f32.mrf.mxu0
        %568 = vdwg.mxu0
        %v569 = vld [vmem:[%s437 + $0x20] sm:$0xf]
        %v570 = vld [vmem:[%s437 + $0x24] sm:$0xf]
        %v571 = vld [vmem:[%s437 + $0x28] sm:$0xf]
        %v572 = vld [vmem:[%s437 + $0x2c] sm:$0xf]
        %v573 = vperm.slane %v461, 0
        %v578 = vunpack.c.l.b16 %v569
        %v579 = vunpack.c.l.b16 %v570
        %v580 = vunpack.c.l.b16 %v571
        %v581 = vunpack.c.l.b16 %v572
        %v582 = vpack.c.b16 %v579, %v578
        %v583 = vpack.c.b16 %v581, %v580
        %586 = vmatpush.bf16.msra.mxu0 0
        %587 = vmatpush.bf16.msra.mxu0 0
        %588 = vmatpush.bf16.msra.mxu0 0
        %589 = vmatpush.bf16.msra.mxu0 0
        %590 = vmatpush.bf16.msra.mxu0 0
        %591 = vmatpush.bf16.msra.mxu0 0
        %592 = vmatpush.bf16.msra.mxu0 %v583
        %593 = vmatpush.bf16.msra.mxu0 %v582
        %594 = vmatmul.bf16.gmra.mxu0 %v523
        %v595 = vpop.f32.mrf.mxu0
        %v596 = vadd.f32 %v573, %v595
        %v597 = vpop.f32.mrf.mxu0
        %598 = vdwg.mxu0
        %vm599 = vcmask 64512
        %v601 = vsel %vm599, %v538, 0
        %v604 = vsel %vm599, %v566, 0
        %606 = vmatpush.xpose.msra.mxu0 0.0
        %607 = vmatpush.xpose.msra.mxu0 0.0
        %608 = vmatpush.xpose.msra.mxu0 0.0
        %609 = vmatpush.xpose.msra.mxu0 0.0
        %610 = vmatpush.xpose.msra.mxu0 0.0
        %611 = vmatpush.xpose.msra.mxu0 0.0
        %612 = vmatpush.xpose.msra.mxu0 0.0
        %613 = vmatpush.xpose.msra.mxu0 0.0
        %614 = vmatpush.xpose.msra.mxu0 0.0
        %615 = vmatpush.xpose.msra.mxu0 0.0
        %616 = vmatpush.xpose.msra.mxu0 0.0
        %617 = vmatpush.xpose.msra.mxu0 0.0
        %618 = vmatpush.xpose.msra.mxu0 0.0
        %619 = vmatpush.xpose.msra.mxu0 0.0
        %620 = vmatpush.xpose.msra.mxu0 0.0
        %621 = vmatpush.xpose.msra.mxu0 %v604
        %622 = vmatmul.f32.gmra.mxu0 %v601
        %v623 = vpop.f32.mrf.mxu0
        %v624 = vadd.f32 %v469, %v623
        %625 = vdwg.mxu0
        %v626 = vsel %vm599, %v624, -inf
        %627 = vmax.xlane.f32.xlu0 %v626
        %v628 = vpop.xlane.xlu0 %627
        %v629 = vsub.f32 %v624, %v628
        %v630 = vmul.f32 %v629, 1.442695
        %v631 = vpow.pop %v630
        %v632 = vsel %vm599, %v631, 0.0
        %633 = vadd.xlane.f32.xlu0 %v632
        %v634 = vpop.xlane.xlu0 %633
        %v635 = vrcp.pop %v634
        %v636 = vmul.f32 %v631, %v635
        %v638 = vsel %vm599, %v636, 0
        %640 = vmatpush.msra.mxu0 0.0
        %641 = vmatpush.msra.mxu0 0.0
        %642 = vmatpush.msra.mxu0 0.0
        %643 = vmatpush.msra.mxu0 0.0
        %644 = vmatpush.msra.mxu0 0.0
        %645 = vmatpush.msra.mxu0 0.0
        %646 = vmatpush.msra.mxu0 0.0
        %647 = vmatpush.msra.mxu0 0.0
        %648 = vmatpush.msra.mxu0 0.0
        %649 = vmatpush.msra.mxu0 0.0
        %650 = vmatpush.msra.mxu0 0.0
        %651 = vmatpush.msra.mxu0 0.0
        %652 = vmatpush.msra.mxu0 0.0
        %653 = vmatpush.msra.mxu0 0.0
        %654 = vmatpush.msra.mxu0 0.0
        %655 = vmatpush.msra.mxu0 %v596
        %656 = vmatmul.f32.gmra.mxu0 %v638
        %v657 = vpop.f32.mrf.mxu0
        %v658 = vadd.f32 0.0, %v657
        %659 = vdwg.mxu0
        %660 = vst.msk [vmem:[#allocation3] sm:$0xff] %vm599, %v658
        %661 = vrot.lane.b32.xlu0 %v538, 120
        %v662 = vpop.permute.xlu0 %661
        %663 = vrot.lane.b32.xlu0 %v566, 120
        %v664 = vpop.permute.xlu0 %663
        %v665 = vsel %vm599, %v662, 0
        %v667 = vsel %vm599, %v664, 0
        %669 = vmatpush.xpose.msra.mxu0 0.0
        %670 = vmatpush.xpose.msra.mxu0 0.0
        %671 = vmatpush.xpose.msra.mxu0 0.0
        %672 = vmatpush.xpose.msra.mxu0 0.0
        %673 = vmatpush.xpose.msra.mxu0 0.0
        %674 = vmatpush.xpose.msra.mxu0 0.0
        %675 = vmatpush.xpose.msra.mxu0 0.0
        %676 = vmatpush.xpose.msra.mxu0 0.0
        %677 = vmatpush.xpose.msra.mxu0 0.0
        %678 = vmatpush.xpose.msra.mxu0 0.0
        %679 = vmatpush.xpose.msra.mxu0 0.0
        %680 = vmatpush.xpose.msra.mxu0 0.0
        %681 = vmatpush.xpose.msra.mxu0 0.0
        %682 = vmatpush.xpose.msra.mxu0 0.0
        %683 = vmatpush.xpose.msra.mxu0 0.0
        %684 = vmatpush.xpose.msra.mxu0 %v667
        %685 = vmatmul.f32.gmra.mxu0 %v665
        %v686 = vpop.f32.mrf.mxu0
        %v687 = vadd.f32 %v469, %v686
        %688 = vdwg.mxu0
        %v689 = vsel %vm599, %v687, -inf
        %690 = vmax.xlane.f32.xlu0 %v689
        %v691 = vpop.xlane.xlu0 %690
        %v692 = vsub.f32 %v687, %v691
        %v693 = vmul.f32 %v692, 1.442695
        %v694 = vpow.pop %v693
        %v695 = vsel %vm599, %v694, 0.0
        %696 = vadd.xlane.f32.xlu0 %v695
        %v697 = vpop.xlane.xlu0 %696
        %v698 = vrcp.pop %v697
        %v699 = vmul.f32 %v694, %v698
        %701 = vrot.lane.b32.xlu0 %v596, 120
        %v702 = vpop.permute.xlu0 %701
        %v705 = vsel %vm599, %v699, 0
        %707 = vmatpush.msra.mxu0 0.0
        %708 = vmatpush.msra.mxu0 0.0
        %709 = vmatpush.msra.mxu0 0.0
        %710 = vmatpush.msra.mxu0 0.0
        %711 = vmatpush.msra.mxu0 0.0
        %712 = vmatpush.msra.mxu0 0.0
        %713 = vmatpush.msra.mxu0 0.0
        %714 = vmatpush.msra.mxu0 0.0
        %715 = vmatpush.msra.mxu0 0.0
        %716 = vmatpush.msra.mxu0 0.0
        %717 = vmatpush.msra.mxu0 0.0
        %718 = vmatpush.msra.mxu0 0.0
        %719 = vmatpush.msra.mxu0 0.0
        %720 = vmatpush.msra.mxu0 0.0
        %721 = vmatpush.msra.mxu0 0.0
        %722 = vmatpush.msra.mxu0 %v702
        %723 = vmatmul.f32.gmra.mxu0 %v705
        %v724 = vpop.f32.mrf.mxu0
        %v725 = vadd.f32 0.0, %v724
        %726 = vdwg.mxu0
        %728 = vrot.lane.b32.xlu0 %v725, 8
        %v729 = vpop.permute.xlu0 %728
        %vm731 = vcmask 130112
        %732 = vst.msk [vmem:[#allocation3] sm:$0xff] %vm731, %v729
        %733 = vrot.lane.b32.xlu0 %v538, 112
        %v734 = vpop.permute.xlu0 %733
        %735 = vrot.lane.b32.xlu0 %v566, 112
        %v736 = vpop.permute.xlu0 %735
        %v737 = vsel %vm599, %v734, 0
        %v739 = vsel %vm599, %v736, 0
        %741 = vmatpush.xpose.msra.mxu0 0.0
        %742 = vmatpush.xpose.msra.mxu0 0.0
        %743 = vmatpush.xpose.msra.mxu0 0.0
        %744 = vmatpush.xpose.msra.mxu0 0.0
        %745 = vmatpush.xpose.msra.mxu0 0.0
        %746 = vmatpush.xpose.msra.mxu0 0.0
        %747 = vmatpush.xpose.msra.mxu0 0.0
        %748 = vmatpush.xpose.msra.mxu0 0.0
        %749 = vmatpush.xpose.msra.mxu0 0.0
        %750 = vmatpush.xpose.msra.mxu0 0.0
        %751 = vmatpush.xpose.msra.mxu0 0.0
        %752 = vmatpush.xpose.msra.mxu0 0.0
        %753 = vmatpush.xpose.msra.mxu0 0.0
        %754 = vmatpush.xpose.msra.mxu0 0.0
        %755 = vmatpush.xpose.msra.mxu0 0.0
        %756 = vmatpush.xpose.msra.mxu0 %v739
        %757 = vmatmul.f32.gmra.mxu0 %v737
        %v758 = vpop.f32.mrf.mxu0
        %v759 = vadd.f32 %v469, %v758
        %760 = vdwg.mxu0
        %v761 = vsel %vm599, %v759, -inf
        %762 = vmax.xlane.f32.xlu0 %v761
        %v763 = vpop.xlane.xlu0 %762
        %v764 = vsub.f32 %v759, %v763
        %v765 = vmul.f32 %v764, 1.442695
        %v766 = vpow.pop %v765
        %v767 = vsel %vm599, %v766, 0.0
        %768 = vadd.xlane.f32.xlu0 %v767
        %v769 = vpop.xlane.xlu0 %768
        %v770 = vrcp.pop %v769
        %v771 = vmul.f32 %v766, %v770
        %772 = vrot.lane.b32.xlu0 %v596, 112
        %v773 = vpop.permute.xlu0 %772
        %v776 = vsel %vm599, %v771, 0
        %778 = vmatpush.msra.mxu0 0.0
        %779 = vmatpush.msra.mxu0 0.0
        %780 = vmatpush.msra.mxu0 0.0
        %781 = vmatpush.msra.mxu0 0.0
        %782 = vmatpush.msra.mxu0 0.0
        %783 = vmatpush.msra.mxu0 0.0
        %784 = vmatpush.msra.mxu0 0.0
        %785 = vmatpush.msra.mxu0 0.0
        %786 = vmatpush.msra.mxu0 0.0
        %787 = vmatpush.msra.mxu0 0.0
        %788 = vmatpush.msra.mxu0 0.0
        %789 = vmatpush.msra.mxu0 0.0
        %790 = vmatpush.msra.mxu0 0.0
        %791 = vmatpush.msra.mxu0 0.0
        %792 = vmatpush.msra.mxu0 0.0
        %793 = vmatpush.msra.mxu0 %v773
        %794 = vmatmul.f32.gmra.mxu0 %v776
        %v795 = vpop.f32.mrf.mxu0
        %v796 = vadd.f32 0.0, %v795
        %797 = vdwg.mxu0
        %799 = vrot.lane.b32.xlu0 %v796, 16
        %v800 = vpop.permute.xlu0 %799
        %vm802 = vcmask 195712
        %803 = vst.msk [vmem:[#allocation3] sm:$0xff] %vm802, %v800
        %804 = vrot.lane.b32.xlu0 %v538, 104
        %v805 = vpop.permute.xlu0 %804
        %806 = vrot.lane.b32.xlu0 %v566, 104
        %v807 = vpop.permute.xlu0 %806
        %v808 = vsel %vm599, %v805, 0
        %v810 = vsel %vm599, %v807, 0
        %812 = vmatpush.xpose.msra.mxu0 0.0
        %813 = vmatpush.xpose.msra.mxu0 0.0
        %814 = vmatpush.xpose.msra.mxu0 0.0
        %815 = vmatpush.xpose.msra.mxu0 0.0
        %816 = vmatpush.xpose.msra.mxu0 0.0
        %817 = vmatpush.xpose.msra.mxu0 0.0
        %818 = vmatpush.xpose.msra.mxu0 0.0
        %819 = vmatpush.xpose.msra.mxu0 0.0
        %820 = vmatpush.xpose.msra.mxu0 0.0
        %821 = vmatpush.xpose.msra.mxu0 0.0
        %822 = vmatpush.xpose.msra.mxu0 0.0
        %823 = vmatpush.xpose.msra.mxu0 0.0
        %824 = vmatpush.xpose.msra.mxu0 0.0
        %825 = vmatpush.xpose.msra.mxu0 0.0
        %826 = vmatpush.xpose.msra.mxu0 0.0
        %827 = vmatpush.xpose.msra.mxu0 %v810
        %828 = vmatmul.f32.gmra.mxu0 %v808
        %v829 = vpop.f32.mrf.mxu0
        %v830 = vadd.f32 %v469, %v829
        %831 = vdwg.mxu0
        %v832 = vsel %vm599, %v830, -inf
        %833 = vmax.xlane.f32.xlu0 %v832
        %v834 = vpop.xlane.xlu0 %833
        %v835 = vsub.f32 %v830, %v834
        %v836 = vmul.f32 %v835, 1.442695
        %v837 = vpow.pop %v836
        %v838 = vsel %vm599, %v837, 0.0
        %839 = vadd.xlane.f32.xlu0 %v838
        %v840 = vpop.xlane.xlu0 %839
        %v841 = vrcp.pop %v840
        %v842 = vmul.f32 %v837, %v841
        %843 = vrot.lane.b32.xlu0 %v596, 104
        %v844 = vpop.permute.xlu0 %843
        %v847 = vsel %vm599, %v842, 0
        %849 = vmatpush.msra.mxu0 0.0
        %850 = vmatpush.msra.mxu0 0.0
        %851 = vmatpush.msra.mxu0 0.0
        %852 = vmatpush.msra.mxu0 0.0
        %853 = vmatpush.msra.mxu0 0.0
        %854 = vmatpush.msra.mxu0 0.0
        %855 = vmatpush.msra.mxu0 0.0
        %856 = vmatpush.msra.mxu0 0.0
        %857 = vmatpush.msra.mxu0 0.0
        %858 = vmatpush.msra.mxu0 0.0
        %859 = vmatpush.msra.mxu0 0.0
        %860 = vmatpush.msra.mxu0 0.0
        %861 = vmatpush.msra.mxu0 0.0
        %862 = vmatpush.msra.mxu0 0.0
        %863 = vmatpush.msra.mxu0 0.0
        %864 = vmatpush.msra.mxu0 %v844
        %865 = vmatmul.f32.gmra.mxu0 %v847
        %v866 = vpop.f32.mrf.mxu0
        %v867 = vadd.f32 0.0, %v866
        %868 = vdwg.mxu0
        %870 = vrot.lane.b32.xlu0 %v867, 24
        %v871 = vpop.permute.xlu0 %870
        %vm873 = vcmask 261312
        %874 = vst.msk [vmem:[#allocation3] sm:$0xff] %vm873, %v871
        %v875 = vld [vmem:[#allocation3] sm:$0xff]
        %v876 = vld [vmem:[%s437 + $0x30] sm:$0xf]
        %v877 = vld [vmem:[%s437 + $0x34] sm:$0xf]
        %v878 = vld [vmem:[%s437 + $0x38] sm:$0xf]
        %v879 = vld [vmem:[%s437 + $0x3c] sm:$0xf]
        %v880 = vpack.c.bf16 %v875, %v875
        %v881 = vperm.slane %v461, 1
        %v886 = vunpack.c.l.b16 %v876
        %v887 = vunpack.c.l.b16 %v877
        %v888 = vunpack.c.l.b16 %v878
        %v889 = vunpack.c.l.b16 %v879
        %v890 = vpack.c.b16 %v887, %v886
        %v891 = vpack.c.b16 %v889, %v888
        %v895 = vsel %vm470, %v880, 0
        %897 = vmatpush.bf16.msra.mxu0 0
        %898 = vmatpush.bf16.msra.mxu0 0
        %899 = vmatpush.bf16.msra.mxu0 0
        %900 = vmatpush.bf16.msra.mxu0 0
        %901 = vmatpush.bf16.msra.mxu0 0
        %902 = vmatpush.bf16.msra.mxu0 0
        %903 = vmatpush.bf16.msra.mxu0 %v891
        %904 = vmatpush.bf16.msra.mxu0 %v890
        %905 = vmatmul.bf16.gmra.mxu0 %v895
        %v906 = vpop.f32.mrf.mxu0
        %v907 = vadd.f32 %v881, %v906
        %v908 = vpop.f32.mrf.mxu0
        %909 = vdwg.mxu0
        %v910 = vadd.f32 %v459, %v907
        %v911 = vsel %vm470, %v910, 0.0
        %912 = vadd.xlane.f32.xlu0 %v911
        %v913 = vpop.xlane.xlu0 %912
        %v914 = vmul.f32 %v913, %v480
        %v915 = vsub.f32 %v910, %v914
        %v916 = vmul.f32 %v915, %v915
        %v917 = vsel %vm470, %v916, 0.0
        %918 = vadd.xlane.f32.xlu0 %v917
        %v919 = vpop.xlane.xlu0 %918
        %v920 = vmul.f32 %v919, %v480
        %v921 = vadd.f32 %v920, 1e-05
        %v922 = vrsqrt.pop %v921
        %v923 = vmul.f32 %v922, %v921
        %v924 = vmul.f32 %v923, %v922
        %v925 = vmul.f32 0.5, %v924
        %v926 = vsub.f32 1.5, %v925
        %v927 = vmul.f32 %v922, %v926
        %vm928 = vweird.f32 %v921
        %vm929 = vweird.f32 %v922
        %vm930 = vmor %vm928, %vm929
        %v931 = vsel %vm930, %v922, %v927
        %v932 = vmul.f32 %v915, %v931
        %v933 = vperm.slane %v460, 2
        %v934 = vmul.f32 %v932, %v933
        %v935 = vperm.slane %v460, 3
        %v936 = vadd.f32 %v934, %v935
        %v937 = vld [vmem:[%s437 + $0x40] sm:$0xf]
        %v938 = vld [vmem:[%s437 + $0x44] sm:$0xf]
        %v939 = vld [vmem:[%s437 + $0x48] sm:$0xf]
        %v940 = vld [vmem:[%s437 + $0x4c] sm:$0xf]
        %v941 = vpack.c.bf16 %v936, %v936
        %v942 = vperm.slane %v461, 2
        %v947 = vunpack.c.l.b16 %v937
        %v948 = vunpack.c.l.b16 %v938
        %v949 = vunpack.c.l.b16 %v939
        %v950 = vunpack.c.l.b16 %v940
        %v951 = vpack.c.b16 %v948, %v947
        %v952 = vpack.c.b16 %v950, %v949
        %v956 = vsel %vm470, %v941, 0
        %958 = vmatpush.bf16.msra.mxu0 0
        %959 = vmatpush.bf16.msra.mxu0 0
        %960 = vmatpush.bf16.msra.mxu0 0
        %961 = vmatpush.bf16.msra.mxu0 0
        %962 = vmatpush.bf16.msra.mxu0 0
        %963 = vmatpush.bf16.msra.mxu0 0
        %964 = vmatpush.bf16.msra.mxu0 %v952
        %965 = vmatpush.bf16.msra.mxu0 %v951
        %966 = vmatmul.bf16.gmra.mxu0 %v956
        %v967 = vpop.f32.mrf.mxu0
        %v968 = vadd.f32 %v942, %v967
        %v969 = vpop.f32.mrf.mxu0
        %970 = vdwg.mxu0
        %v971 = vmul.f32 %v968, 0.35355338
        %v972 = vld [vmem:[%s427] sm:$0xf]
        %v973 = vld [vmem:[%s437 + $0x50] sm:$0xf]
        %v974 = vld [vmem:[%s437 + $0x54] sm:$0xf]
        %v975 = vld [vmem:[%s437 + $0x58] sm:$0xf]
        %v976 = vld [vmem:[%s437 + $0x5c] sm:$0xf]
        %v977 = vperm.slane %v461, 3
        %v982 = vunpack.c.l.b16 %v973
        %v983 = vunpack.c.l.b16 %v974
        %v984 = vunpack.c.l.b16 %v975
        %v985 = vunpack.c.l.b16 %v976
        %v986 = vpack.c.b16 %v983, %v982
        %v987 = vpack.c.b16 %v985, %v984
        %v991 = vsel %vm470, %v972, 0
        %993 = vmatpush.bf16.msra.mxu0 0
        %994 = vmatpush.bf16.msra.mxu0 0
        %995 = vmatpush.bf16.msra.mxu0 0
        %996 = vmatpush.bf16.msra.mxu0 0
        %997 = vmatpush.bf16.msra.mxu0 0
        %998 = vmatpush.bf16.msra.mxu0 0
        %999 = vmatpush.bf16.msra.mxu0 %v987
        %1000 = vmatpush.bf16.msra.mxu0 %v986
        %1001 = vmatmul.bf16.gmra.mxu0 %v991
        %v1002 = vpop.f32.mrf.mxu0
        %v1003 = vadd.f32 %v977, %v1002
        %v1004 = vpop.f32.mrf.mxu0
        %1005 = vdwg.mxu0
        %v1006 = vld [vmem:[%s437 + $0x60] sm:$0xf]
        %v1007 = vld [vmem:[%s437 + $0x64] sm:$0xf]
        %v1008 = vld [vmem:[%s437 + $0x68] sm:$0xf]
        %v1009 = vld [vmem:[%s437 + $0x6c] sm:$0xf]
        %v1010 = vperm.slane %v461, 4
        %v1015 = vunpack.c.l.b16 %v1006
        %v1016 = vunpack.c.l.b16 %v1007
        %v1017 = vunpack.c.l.b16 %v1008
        %v1018 = vunpack.c.l.b16 %v1009
        %v1019 = vpack.c.b16 %v1016, %v1015
        %v1020 = vpack.c.b16 %v1018, %v1017
        %1023 = vmatpush.bf16.msra.mxu0 0
        %1024 = vmatpush.bf16.msra.mxu0 0
        %1025 = vmatpush.bf16.msra.mxu0 0
        %1026 = vmatpush.bf16.msra.mxu0 0
        %1027 = vmatpush.bf16.msra.mxu0 0
        %1028 = vmatpush.bf16.msra.mxu0 0
        %1029 = vmatpush.bf16.msra.mxu0 %v1020
        %1030 = vmatpush.bf16.msra.mxu0 %v1019
        %1031 = vmatmul.bf16.gmra.mxu0 %v991
        %v1032 = vpop.f32.mrf.mxu0
        %v1033 = vadd.f32 %v1010, %v1032
        %v1034 = vpop.f32.mrf.mxu0
        %1035 = vdwg.mxu0
        %v1037 = vsel %vm599, %v971, 0
        %v1040 = vsel %vm599, %v1003, 0
        %1042 = vmatpush.xpose.msra.mxu0 0.0
        %1043 = vmatpush.xpose.msra.mxu0 0.0
        %1044 = vmatpush.xpose.msra.mxu0 0.0
        %1045 = vmatpush.xpose.msra.mxu0 0.0
        %1046 = vmatpush.xpose.msra.mxu0 0.0
        %1047 = vmatpush.xpose.msra.mxu0 0.0
        %1048 = vmatpush.xpose.msra.mxu0 0.0
        %1049 = vmatpush.xpose.msra.mxu0 0.0
        %1050 = vmatpush.xpose.msra.mxu0 0.0
        %1051 = vmatpush.xpose.msra.mxu0 0.0
        %1052 = vmatpush.xpose.msra.mxu0 0.0
        %1053 = vmatpush.xpose.msra.mxu0 0.0
        %1054 = vmatpush.xpose.msra.mxu0 0.0
        %1055 = vmatpush.xpose.msra.mxu0 0.0
        %1056 = vmatpush.xpose.msra.mxu0 0.0
        %1057 = vmatpush.xpose.msra.mxu0 %v1040
        %1058 = vmatmul.f32.gmra.mxu0 %v1037
        %v1059 = vpop.f32.mrf.mxu0
        %v1060 = vadd.f32 0.0, %v1059
        %1061 = vdwg.mxu0
        %v1062 = vsel %vm599, %v1060, -inf
        %1063 = vmax.xlane.f32.xlu0 %v1062
        %v1064 = vpop.xlane.xlu0 %1063
        %v1065 = vsub.f32 %v1060, %v1064
        %v1066 = vmul.f32 %v1065, 1.442695
        %v1067 = vpow.pop %v1066
        %v1068 = vsel %vm599, %v1067, 0.0
        %1069 = vadd.xlane.f32.xlu0 %v1068
        %v1070 = vpop.xlane.xlu0 %1069
        %v1071 = vrcp.pop %v1070
        %v1072 = vmul.f32 %v1067, %v1071
        %v1074 = vsel %vm599, %v1072, 0
        %1076 = vmatpush.msra.mxu0 0.0
        %1077 = vmatpush.msra.mxu0 0.0
        %1078 = vmatpush.msra.mxu0 0.0
        %1079 = vmatpush.msra.mxu0 0.0
        %1080 = vmatpush.msra.mxu0 0.0
        %1081 = vmatpush.msra.mxu0 0.0
        %1082 = vmatpush.msra.mxu0 0.0
        %1083 = vmatpush.msra.mxu0 0.0
        %1084 = vmatpush.msra.mxu0 0.0
        %1085 = vmatpush.msra.mxu0 0.0
        %1086 = vmatpush.msra.mxu0 0.0
        %1087 = vmatpush.msra.mxu0 0.0
        %1088 = vmatpush.msra.mxu0 0.0
        %1089 = vmatpush.msra.mxu0 0.0
        %1090 = vmatpush.msra.mxu0 0.0
        %1091 = vmatpush.msra.mxu0 %v1033
        %1092 = vmatmul.f32.gmra.mxu0 %v1074
        %v1093 = vpop.f32.mrf.mxu0
        %v1094 = vadd.f32 0.0, %v1093
        %1095 = vdwg.mxu0
        %1096 = vst.msk [vmem:[#allocation3] sm:$0xff] %vm599, %v1094
        %1097 = vrot.lane.b32.xlu0 %v971, 120
        %v1098 = vpop.permute.xlu0 %1097
        %1099 = vrot.lane.b32.xlu0 %v1003, 120
        %v1100 = vpop.permute.xlu0 %1099
        %v1101 = vsel %vm599, %v1098, 0
        %v1103 = vsel %vm599, %v1100, 0
        %1105 = vmatpush.xpose.msra.mxu0 0.0
        %1106 = vmatpush.xpose.msra.mxu0 0.0
        %1107 = vmatpush.xpose.msra.mxu0 0.0
        %1108 = vmatpush.xpose.msra.mxu0 0.0
        %1109 = vmatpush.xpose.msra.mxu0 0.0
        %1110 = vmatpush.xpose.msra.mxu0 0.0
        %1111 = vmatpush.xpose.msra.mxu0 0.0
        %1112 = vmatpush.xpose.msra.mxu0 0.0
        %1113 = vmatpush.xpose.msra.mxu0 0.0
        %1114 = vmatpush.xpose.msra.mxu0 0.0
        %1115 = vmatpush.xpose.msra.mxu0 0.0
        %1116 = vmatpush.xpose.msra.mxu0 0.0
        %1117 = vmatpush.xpose.msra.mxu0 0.0
        %1118 = vmatpush.xpose.msra.mxu0 0.0
        %1119 = vmatpush.xpose.msra.mxu0 0.0
        %1120 = vmatpush.xpose.msra.mxu0 %v1103
        %1121 = vmatmul.f32.gmra.mxu0 %v1101
        %v1122 = vpop.f32.mrf.mxu0
        %v1123 = vadd.f32 0.0, %v1122
        %1124 = vdwg.mxu0
        %v1125 = vsel %vm599, %v1123, -inf
        %1126 = vmax.xlane.f32.xlu0 %v1125
        %v1127 = vpop.xlane.xlu0 %1126
        %v1128 = vsub.f32 %v1123, %v1127
        %v1129 = vmul.f32 %v1128, 1.442695
        %v1130 = vpow.pop %v1129
        %v1131 = vsel %vm599, %v1130, 0.0
        %1132 = vadd.xlane.f32.xlu0 %v1131
        %v1133 = vpop.xlane.xlu0 %1132
        %v1134 = vrcp.pop %v1133
        %v1135 = vmul.f32 %v1130, %v1134
        %1137 = vrot.lane.b32.xlu0 %v1033, 120
        %v1138 = vpop.permute.xlu0 %1137
        %v1141 = vsel %vm599, %v1135, 0
        %1143 = vmatpush.msra.mxu0 0.0
        %1144 = vmatpush.msra.mxu0 0.0
        %1145 = vmatpush.msra.mxu0 0.0
        %1146 = vmatpush.msra.mxu0 0.0
        %1147 = vmatpush.msra.mxu0 0.0
        %1148 = vmatpush.msra.mxu0 0.0
        %1149 = vmatpush.msra.mxu0 0.0
        %1150 = vmatpush.msra.mxu0 0.0
        %1151 = vmatpush.msra.mxu0 0.0
        %1152 = vmatpush.msra.mxu0 0.0
        %1153 = vmatpush.msra.mxu0 0.0
        %1154 = vmatpush.msra.mxu0 0.0
        %1155 = vmatpush.msra.mxu0 0.0
        %1156 = vmatpush.msra.mxu0 0.0
        %1157 = vmatpush.msra.mxu0 0.0
        %1158 = vmatpush.msra.mxu0 %v1138
        %1159 = vmatmul.f32.gmra.mxu0 %v1141
        %v1160 = vpop.f32.mrf.mxu0
        %v1161 = vadd.f32 0.0, %v1160
        %1162 = vdwg.mxu0
        %1164 = vrot.lane.b32.xlu0 %v1161, 8
        %v1165 = vpop.permute.xlu0 %1164
        %1167 = vst.msk [vmem:[#allocation3] sm:$0xff] %vm731, %v1165
        %1168 = vrot.lane.b32.xlu0 %v971, 112
        %v1169 = vpop.permute.xlu0 %1168
        %1170 = vrot.lane.b32.xlu0 %v1003, 112
        %v1171 = vpop.permute.xlu0 %1170
        %v1172 = vsel %vm599, %v1169, 0
        %v1174 = vsel %vm599, %v1171, 0
        %1176 = vmatpush.xpose.msra.mxu0 0.0
        %1177 = vmatpush.xpose.msra.mxu0 0.0
        %1178 = vmatpush.xpose.msra.mxu0 0.0
        %1179 = vmatpush.xpose.msra.mxu0 0.0
        %1180 = vmatpush.xpose.msra.mxu0 0.0
        %1181 = vmatpush.xpose.msra.mxu0 0.0
        %1182 = vmatpush.xpose.msra.mxu0 0.0
        %1183 = vmatpush.xpose.msra.mxu0 0.0
        %1184 = vmatpush.xpose.msra.mxu0 0.0
        %1185 = vmatpush.xpose.msra.mxu0 0.0
        %1186 = vmatpush.xpose.msra.mxu0 0.0
        %1187 = vmatpush.xpose.msra.mxu0 0.0
        %1188 = vmatpush.xpose.msra.mxu0 0.0
        %1189 = vmatpush.xpose.msra.mxu0 0.0
        %1190 = vmatpush.xpose.msra.mxu0 0.0
        %1191 = vmatpush.xpose.msra.mxu0 %v1174
        %1192 = vmatmul.f32.gmra.mxu0 %v1172
        %v1193 = vpop.f32.mrf.mxu0
        %v1194 = vadd.f32 0.0, %v1193
        %1195 = vdwg.mxu0
        %v1196 = vsel %vm599, %v1194, -inf
        %1197 = vmax.xlane.f32.xlu0 %v1196
        %v1198 = vpop.xlane.xlu0 %1197
        %v1199 = vsub.f32 %v1194, %v1198
        %v1200 = vmul.f32 %v1199, 1.442695
        %v1201 = vpow.pop %v1200
        %v1202 = vsel %vm599, %v1201, 0.0
        %1203 = vadd.xlane.f32.xlu0 %v1202
        %v1204 = vpop.xlane.xlu0 %1203
        %v1205 = vrcp.pop %v1204
        %v1206 = vmul.f32 %v1201, %v1205
        %1207 = vrot.lane.b32.xlu0 %v1033, 112
        %v1208 = vpop.permute.xlu0 %1207
        %v1211 = vsel %vm599, %v1206, 0
        %1213 = vmatpush.msra.mxu0 0.0
        %1214 = vmatpush.msra.mxu0 0.0
        %1215 = vmatpush.msra.mxu0 0.0
        %1216 = vmatpush.msra.mxu0 0.0
        %1217 = vmatpush.msra.mxu0 0.0
        %1218 = vmatpush.msra.mxu0 0.0
        %1219 = vmatpush.msra.mxu0 0.0
        %1220 = vmatpush.msra.mxu0 0.0
        %1221 = vmatpush.msra.mxu0 0.0
        %1222 = vmatpush.msra.mxu0 0.0
        %1223 = vmatpush.msra.mxu0 0.0
        %1224 = vmatpush.msra.mxu0 0.0
        %1225 = vmatpush.msra.mxu0 0.0
        %1226 = vmatpush.msra.mxu0 0.0
        %1227 = vmatpush.msra.mxu0 0.0
        %1228 = vmatpush.msra.mxu0 %v1208
        %1229 = vmatmul.f32.gmra.mxu0 %v1211
        %v1230 = vpop.f32.mrf.mxu0
        %v1231 = vadd.f32 0.0, %v1230
        %1232 = vdwg.mxu0
        %1234 = vrot.lane.b32.xlu0 %v1231, 16
        %v1235 = vpop.permute.xlu0 %1234
        %1237 = vst.msk [vmem:[#allocation3] sm:$0xff] %vm802, %v1235
        %1238 = vrot.lane.b32.xlu0 %v971, 104
        %v1239 = vpop.permute.xlu0 %1238
        %1240 = vrot.lane.b32.xlu0 %v1003, 104
        %v1241 = vpop.permute.xlu0 %1240
        %v1242 = vsel %vm599, %v1239, 0
        %v1244 = vsel %vm599, %v1241, 0
        %1246 = vmatpush.xpose.msra.mxu0 0.0
        %1247 = vmatpush.xpose.msra.mxu0 0.0
        %1248 = vmatpush.xpose.msra.mxu0 0.0
        %1249 = vmatpush.xpose.msra.mxu0 0.0
        %1250 = vmatpush.xpose.msra.mxu0 0.0
        %1251 = vmatpush.xpose.msra.mxu0 0.0
        %1252 = vmatpush.xpose.msra.mxu0 0.0
        %1253 = vmatpush.xpose.msra.mxu0 0.0
        %1254 = vmatpush.xpose.msra.mxu0 0.0
        %1255 = vmatpush.xpose.msra.mxu0 0.0
        %1256 = vmatpush.xpose.msra.mxu0 0.0
        %1257 = vmatpush.xpose.msra.mxu0 0.0
        %1258 = vmatpush.xpose.msra.mxu0 0.0
        %1259 = vmatpush.xpose.msra.mxu0 0.0
        %1260 = vmatpush.xpose.msra.mxu0 0.0
        %1261 = vmatpush.xpose.msra.mxu0 %v1244
        %1262 = vmatmul.f32.gmra.mxu0 %v1242
        %v1263 = vpop.f32.mrf.mxu0
        %v1264 = vadd.f32 0.0, %v1263
        %1265 = vdwg.mxu0
        %v1266 = vsel %vm599, %v1264, -inf
        %1267 = vmax.xlane.f32.xlu0 %v1266
        %v1268 = vpop.xlane.xlu0 %1267
        %v1269 = vsub.f32 %v1264, %v1268
        %v1270 = vmul.f32 %v1269, 1.442695
        %v1271 = vpow.pop %v1270
        %v1272 = vsel %vm599, %v1271, 0.0
        %1273 = vadd.xlane.f32.xlu0 %v1272
        %v1274 = vpop.xlane.xlu0 %1273
        %v1275 = vrcp.pop %v1274
        %v1276 = vmul.f32 %v1271, %v1275
        %1277 = vrot.lane.b32.xlu0 %v1033, 104
        %v1278 = vpop.permute.xlu0 %1277
        %v1281 = vsel %vm599, %v1276, 0
        %1283 = vmatpush.msra.mxu0 0.0
        %1284 = vmatpush.msra.mxu0 0.0
        %1285 = vmatpush.msra.mxu0 0.0
        %1286 = vmatpush.msra.mxu0 0.0
        %1287 = vmatpush.msra.mxu0 0.0
        %1288 = vmatpush.msra.mxu0 0.0
        %1289 = vmatpush.msra.mxu0 0.0
        %1290 = vmatpush.msra.mxu0 0.0
        %1291 = vmatpush.msra.mxu0 0.0
        %1292 = vmatpush.msra.mxu0 0.0
        %1293 = vmatpush.msra.mxu0 0.0
        %1294 = vmatpush.msra.mxu0 0.0
        %1295 = vmatpush.msra.mxu0 0.0
        %1296 = vmatpush.msra.mxu0 0.0
        %1297 = vmatpush.msra.mxu0 0.0
        %1298 = vmatpush.msra.mxu0 %v1278
        %1299 = vmatmul.f32.gmra.mxu0 %v1281
        %v1300 = vpop.f32.mrf.mxu0
        %v1301 = vadd.f32 0.0, %v1300
        %1302 = vdwg.mxu0
        %1304 = vrot.lane.b32.xlu0 %v1301, 24
        %v1305 = vpop.permute.xlu0 %1304
        %1307 = vst.msk [vmem:[#allocation3] sm:$0xff] %vm873, %v1305
        %v1308 = vld [vmem:[#allocation3] sm:$0xff]
        %v1309 = vld [vmem:[%s437 + $0x70] sm:$0xf]
        %v1310 = vld [vmem:[%s437 + $0x74] sm:$0xf]
        %v1311 = vld [vmem:[%s437 + $0x78] sm:$0xf]
        %v1312 = vld [vmem:[%s437 + $0x7c] sm:$0xf]
        %v1313 = vpack.c.bf16 %v1308, %v1308
        %v1314 = vperm.slane %v461, 5
        %v1319 = vunpack.c.l.b16 %v1309
        %v1320 = vunpack.c.l.b16 %v1310
        %v1321 = vunpack.c.l.b16 %v1311
        %v1322 = vunpack.c.l.b16 %v1312
        %v1323 = vpack.c.b16 %v1320, %v1319
        %v1324 = vpack.c.b16 %v1322, %v1321
        %v1328 = vsel %vm470, %v1313, 0
        %1330 = vmatpush.bf16.msra.mxu0 0
        %1331 = vmatpush.bf16.msra.mxu0 0
        %1332 = vmatpush.bf16.msra.mxu0 0
        %1333 = vmatpush.bf16.msra.mxu0 0
        %1334 = vmatpush.bf16.msra.mxu0 0
        %1335 = vmatpush.bf16.msra.mxu0 0
        %1336 = vmatpush.bf16.msra.mxu0 %v1324
        %1337 = vmatpush.bf16.msra.mxu0 %v1323
        %1338 = vmatmul.bf16.gmra.mxu0 %v1328
        %v1339 = vpop.f32.mrf.mxu0
        %v1340 = vadd.f32 %v1314, %v1339
        %v1341 = vpop.f32.mrf.mxu0
        %1342 = vdwg.mxu0
        %v1343 = vadd.f32 %v910, %v1340
        %v1344 = vsel %vm470, %v1343, 0.0
        %1345 = vadd.xlane.f32.xlu0 %v1344
        %v1346 = vpop.xlane.xlu0 %1345
        %v1347 = vmul.f32 %v1346, %v480
        %v1348 = vsub.f32 %v1343, %v1347
        %v1349 = vmul.f32 %v1348, %v1348
        %v1350 = vsel %vm470, %v1349, 0.0
        %1351 = vadd.xlane.f32.xlu0 %v1350
        %v1352 = vpop.xlane.xlu0 %1351
        %v1353 = vmul.f32 %v1352, %v480
        %v1354 = vadd.f32 %v1353, 1e-05
        %v1355 = vrsqrt.pop %v1354
        %v1356 = vmul.f32 %v1355, %v1354
        %v1357 = vmul.f32 %v1356, %v1355
        %v1358 = vmul.f32 0.5, %v1357
        %v1359 = vsub.f32 1.5, %v1358
        %v1360 = vmul.f32 %v1355, %v1359
        %vm1361 = vweird.f32 %v1354
        %vm1362 = vweird.f32 %v1355
        %vm1363 = vmor %vm1361, %vm1362
        %v1364 = vsel %vm1363, %v1355, %v1360
        %v1365 = vmul.f32 %v1348, %v1364
        %v1366 = vperm.slane %v460, 4
        %v1367 = vmul.f32 %v1365, %v1366
        %v1368 = vperm.slane %v460, 5
        %v1369 = vadd.f32 %v1367, %v1368
        %v1370 = vld [vmem:[%s442] sm:$0xf]
        %v1371 = vld [vmem:[%s442 + $0x4] sm:$0xf]
        %v1372 = vld [vmem:[%s442 + $0x8] sm:$0xf]
        %v1373 = vld [vmem:[%s442 + $0xc] sm:$0xf]
        %v1374 = vld [vmem:[%s445] sm:$0x1]
        %v1375 = vpack.c.bf16 %v1369, %v1369
        %v1377 = vperm.slane %v1374, 0
        %v1383 = vunpack.c.l.b16 %v1370
        %v1384 = vunpack.c.l.b16 %v1371
        %v1385 = vunpack.c.l.b16 %v1372
        %v1386 = vunpack.c.l.b16 %v1373
        %v1387 = vpack.c.b16 %v1384, %v1383
        %v1388 = vpack.c.b16 %v1386, %v1385
        %v1392 = vsel %vm470, %v1375, 0
        %1394 = vmatpush.bf16.msra.mxu0 0
        %1395 = vmatpush.bf16.msra.mxu0 0
        %1396 = vmatpush.bf16.msra.mxu0 0
        %1397 = vmatpush.bf16.msra.mxu0 0
        %1398 = vmatpush.bf16.msra.mxu0 0
        %1399 = vmatpush.bf16.msra.mxu0 0
        %1400 = vmatpush.bf16.msra.mxu0 %v1388
        %1401 = vmatpush.bf16.msra.mxu0 %v1387
        %1402 = vmatmul.bf16.gmra.mxu0 %v1392
        %v1403 = vpop.f32.mrf.mxu0
        %v1404 = vadd.f32 %v1377, %v1403
        %v1405 = vpop.f32.mrf.mxu0
        %1406 = vdwg.mxu0
        %v1407 = vmul.f32 %v1404, 0.5
        %v1408 = vmul.f32 %v1404, 0.044715
        %v1409 = vmul.f32 %v1408, %v1404
        %v1410 = vmul.f32 %v1409, %v1404
        %v1411 = vadd.f32 %v1404, %v1410
        %v1412 = vmul.f32 %v1411, 0.7978846
        %v1413 = vtanh.pop %v1412
        %v1414 = vadd.f32 %v1413, 1.0
        %v1415 = vmul.f32 %v1407, %v1414
        %v1416 = vld [vmem:[%s450] sm:$0xf]
        %v1417 = vld [vmem:[%s450 + $0x4] sm:$0xf]
        %v1418 = vld [vmem:[%s450 + $0x8] sm:$0xf]
        %v1419 = vld [vmem:[%s450 + $0xc] sm:$0xf]
        %v1420 = vld [vmem:[%s450 + $0x10] sm:$0xf]
        %v1421 = vld [vmem:[%s450 + $0x14] sm:$0xf]
        %v1422 = vld [vmem:[%s450 + $0x18] sm:$0xf]
        %v1423 = vld [vmem:[%s450 + $0x1c] sm:$0xf]
        %v1424 = vld [vmem:[%s450 + $0x20] sm:$0xf]
        %v1425 = vld [vmem:[%s450 + $0x24] sm:$0xf]
        %v1426 = vld [vmem:[%s450 + $0x28] sm:$0xf]
        %v1427 = vld [vmem:[%s450 + $0x2c] sm:$0xf]
        %v1428 = vld [vmem:[%s450 + $0x30] sm:$0xf]
        %v1429 = vld [vmem:[%s450 + $0x34] sm:$0xf]
        %v1430 = vld [vmem:[%s450 + $0x38] sm:$0xf]
        %v1431 = vld [vmem:[%s450 + $0x3c] sm:$0xf]
        %v1432 = vpack.c.bf16 %v1415, %v1415
        %v1433 = vperm.slane %v461, 6
        %v1450 = vunpack.c.l.b16 %v1416
        %v1451 = vunpack.c.l.b16 %v1417
        %v1452 = vunpack.c.l.b16 %v1418
        %v1453 = vunpack.c.l.b16 %v1419
        %v1454 = vunpack.c.l.b16 %v1420
        %v1455 = vunpack.c.l.b16 %v1421
        %v1456 = vunpack.c.l.b16 %v1422
        %v1457 = vunpack.c.l.b16 %v1423
        %v1458 = vunpack.c.l.b16 %v1424
        %v1459 = vunpack.c.l.b16 %v1425
        %v1460 = vunpack.c.l.b16 %v1426
        %v1461 = vunpack.c.l.b16 %v1427
        %v1462 = vunpack.c.l.b16 %v1428
        %v1463 = vunpack.c.l.b16 %v1429
        %v1464 = vunpack.c.l.b16 %v1430
        %v1465 = vunpack.c.l.b16 %v1431
        %v1466 = vpack.c.b16 %v1451, %v1450
        %v1467 = vpack.c.b16 %v1453, %v1452
        %v1468 = vpack.c.b16 %v1455, %v1454
        %v1469 = vpack.c.b16 %v1457, %v1456
        %v1470 = vpack.c.b16 %v1459, %v1458
        %v1471 = vpack.c.b16 %v1461, %v1460
        %v1472 = vpack.c.b16 %v1463, %v1462
        %v1473 = vpack.c.b16 %v1465, %v1464
        %1482 = vmatpush.bf16.msra.mxu0 %v1473
        %1483 = vmatpush.bf16.msra.mxu0 %v1472
        %1484 = vmatpush.bf16.msra.mxu0 %v1471
        %1485 = vmatpush.bf16.msra.mxu0 %v1470
        %1486 = vmatpush.bf16.msra.mxu0 %v1469
        %1487 = vmatpush.bf16.msra.mxu0 %v1468
        %1488 = vmatpush.bf16.msra.mxu0 %v1467
        %1489 = vmatpush.bf16.msra.mxu0 %v1466
        %1490 = vmatmul.bf16.gmra.mxu0 %v1432
        %v1491 = vpop.f32.mrf.mxu0
        %v1492 = vadd.f32 %v1433, %v1491
        %v1493 = vpop.f32.mrf.mxu0
        %1494 = vdwg.mxu0
        %v1495 = vadd.f32 %v1343, %v1492
        %1496 = vst.msk [vmem:[#allocation2] sm:$0xff] %vm470, %v1495
        %p1497 = scmp.eq.s32.totalorder %s28, 1
        // Predicated region
        $region61: #{tpu_custom_call.1} parent=55 // pred_check
          %p1498 = pneg %p1497
        $region62: #{tpu_custom_call.1} parent=55 // pred_check_branch
          %1500 = sbr.rel (%p1498) target = $region64
        $region63: #{tpu_custom_call.1} parent=55 // pred_region
          %v1501 = vld [vmem:[%s7] sm:$0x1]
          %v1502 = vld [vmem:[%s8] sm:$0x1]
          %vm1503 = vcmask 254976
          %v1504 = vsel %vm1503, %v1495, 0.0
          %1505 = vadd.xlane.f32.xlu0 %v1504
          %v1506 = vpop.xlane.xlu0 %1505
          %v1507 = vmul.f32 %v1506, %v480
          %v1508 = vsub.f32 %v1495, %v1507
          %v1509 = vmul.f32 %v1508, %v1508
          %v1510 = vsel %vm1503, %v1509, 0.0
          %1511 = vadd.xlane.f32.xlu0 %v1510
          %v1512 = vpop.xlane.xlu0 %1511
          %v1513 = vmul.f32 %v1512, %v480
          %v1514 = vadd.f32 %v1513, 1e-05
          %v1515 = vrsqrt.pop %v1514
          %v1516 = vmul.f32 %v1515, %v1514
          %v1517 = vmul.f32 %v1516, %v1515
          %v1518 = vmul.f32 0.5, %v1517
          %v1519 = vsub.f32 1.5, %v1518
          %v1520 = vmul.f32 %v1515, %v1519
          %vm1521 = vweird.f32 %v1514
          %vm1522 = vweird.f32 %v1515
          %vm1523 = vmor %vm1521, %vm1522
          %v1524 = vsel %vm1523, %v1515, %v1520
          %v1525 = vmul.f32 %v1508, %v1524
          %v1527 = vperm.slane %v1501, 0
          %v1529 = vmul.f32 %v1525, %v1527
          %v1531 = vperm.slane %v1502, 0
          %v1533 = vadd.f32 %v1529, %v1531
          %1534 = vst.msk [vmem:[%s419] sm:$0x3] %vm1503, %v1533
        $region64: #{tpu_custom_call.1} parent=55 // pred_fallthru
          _
        %s1535 = sand.u32 %s267, 1
        %s1536 = scalar_lea.sflag [#allocation5], %s1535
        %s1537 = sand.u32 %s267, 1
        %s1538 = smul.addr %s1537, 2
        %s1539 = scalar_lea.vmem [#allocation4], %s1538
        // Predicated region
        $region65: #{tpu_custom_call.1} parent=55 // pred_check
          %p1540 = pneg %p277
        $region66: #{tpu_custom_call.1} parent=55 // pred_check_branch
          %1542 = sbr.rel (%p1540) target = $region68
        $region67: #{tpu_custom_call.1} parent=55 // pred_region
          %1544 = vsyncadd %s1536, 0
          %s1545 = smul.addr %s27, 2
          %s1546 = scalar_lea.hbm %s9, %s1545
          %s1548 = sshll.u32 %s1539, 4
          %s1549 = int_to_ptr.vmem [resolvable:$true] %s1548
          %s1550 = sshll.u32 %s1546, 4
          %s1551 = int_to_ptr.hbm [resolvable:$true] %s1550
          %1553 = dma.vmem_to_hbm [thread:$0]  %s1549, 32, %s1551, %s1536
        $region68: #{tpu_custom_call.1} parent=55 // pred_fallthru
          _
      $region56: #{tpu_custom_call.1} parent=5 // pred_fallthru
        _
      %p1554 = scmp.le.s32.totalorder 2, %s18
      // Predicated region
      $region69: #{tpu_custom_call.1} parent=5 // pred_check
        %p1555 = pneg %p1554
      $region70: #{tpu_custom_call.1} parent=5 // pred_check_branch
        %1557 = sbr.rel (%p1555) target = $region72
      $region71: #{tpu_custom_call.1} parent=5 // pred_region
        %s1558 = ssub.s32 %s18, 2
        // Predicated region
        $region73: #{tpu_custom_call.1} parent=71 // pred_check
          %p1559 = pneg %p283
        $region74: #{tpu_custom_call.1} parent=71 // pred_check_branch
          %1561 = sbr.rel (%p1559) target = $region76
        $region75: #{tpu_custom_call.1} parent=71 // pred_region
          %s1562 = sand.u32 %s268, 1
          %s1563 = scalar_lea.sflag [#allocation5], %s1562
          %s1564 = sand.u32 %s268, 1
          %s1565 = smul.addr %s1564, 2
          %s1566 = scalar_lea.vmem [#allocation4], %s1565
          %1568 = dma.done %s1563, 32
        $region76: #{tpu_custom_call.1} parent=71 // pred_fallthru
          _
      $region72: #{tpu_custom_call.1} parent=5 // pred_fallthru
        _
    $region6: #{tpu_custom_call.1} parent=1 // loop_footer
      %s22 = sadd.s32 1, %s18
    $region7: #{tpu_custom_call.1} parent=1 // loop_footer_branch
      %17 = sbr.rel target = $region3
    $region8: #{tpu_custom_call.1} parent=1 // loop_exit
      _
    %1569 = vsyncpa [#allocation5], 1
    %s1570 = scalar_lea.sflag [#allocation5], 1
    %1571 = vsyncpa %s1570, 1

</llo_original>
